<compile_context>
chip_gen: v7x
topology: tpu7x:2x2x1
jax: 0.10.0
libtpu: 0.0.40
codegen_flags: <defaults>
</compile_context>

<pallas_src>
import jax
import jax.numpy as jnp
from jax.experimental import pallas as pl
from jax.experimental.pallas import tpu as pltpu


def _lrelu(h, slope=0.1):
    # nn.LeakyReLU(0.1) as in the module spec.
    return jnp.where(h > 0, h, slope * h)


def visual_encoder_kernel(x_ref,
                          w1_ref, b1_ref,
                          w2_ref, b2_ref,
                          w3_ref, b3_ref,
                          wh_ref, bh_ref,
                          out_ref):
    # Matmul operands in the weights' dtype (bf16 by default), f32 accumulate
    # on the MXU, epilogue (bias + LeakyReLU) in f32 on the VPU.
    cdt = w1_ref.dtype
    x = x_ref[...]
    h = _lrelu(jnp.dot(x, w1_ref[...],
                       preferred_element_type=jnp.float32) + b1_ref[...])
    h = _lrelu(jnp.dot(h.astype(cdt), w2_ref[...],
                       preferred_element_type=jnp.float32) + b2_ref[...])
    h = _lrelu(jnp.dot(h.astype(cdt), w3_ref[...],
                       preferred_element_type=jnp.float32) + b3_ref[...])
    # Fused heads: single lane-dense (tm, 2L) output = [means | log_vars].
    out_ref[...] = (jnp.dot(h.astype(cdt), wh_ref[...],
                            preferred_element_type=jnp.float32)
                    + bh_ref[...]).astype(out_ref.dtype)


def visual_encoder(x, params, *, tm=128, compute_dtype=jnp.bfloat16):
    """x: (N, feat_dim) float32. Returns (means, log_vars), each (N, latent)."""
    (w1, b1, w2, b2, w3, b3, wm, bm, wv, bv) = params
    N, D0 = x.shape
    D1 = w2.shape[1]          # feat_dim // 2
    D2 = w3.shape[1]          # latent * 2
    L = wm.shape[1]           # latent

    # Fuse means / log_var heads -> lane-dense (D2, 2L) weight, (1, 2L) bias.
    wh = jnp.concatenate([wm, wv], axis=1)
    bh = jnp.concatenate([bm, bv], axis=1)

    cdt = compute_dtype
    xc = x.astype(cdt)
    w1c, w2c, w3c, whc = (w.astype(cdt) for w in (w1, w2, w3, wh))
    b1f, b2f, b3f, bhf = (b.astype(jnp.float32) for b in (b1, b2, b3, bh))

    tm_eff = min(tm, N)                      # full batch if it is small
    grid = (pl.cdiv(N, tm_eff),)

    def full(shape):
        return pl.BlockSpec(shape, lambda i: (0,) * len(shape))

    out = pl.pallas_call(
        visual_encoder_kernel,
        out_shape=jax.ShapeDtypeStruct((N, 2 * L), jnp.float32),
        grid_spec=pltpu.PrefetchScalarGridSpec(
            num_scalar_prefetch=0,
            grid=grid,
            in_specs=[
                pl.BlockSpec((tm_eff, D0), lambda i: (i, 0)),   # x tile
                full((D0, D0)), full((1, D0)),                  # fc1
                full((D0, D1)), full((1, D1)),                  # fc2
                full((D1, D2)), full((1, D2)),                  # fc3
                full((D2, 2 * L)), full((1, 2 * L)),            # fused heads
            ],
            out_specs=pl.BlockSpec((tm_eff, 2 * L), lambda i: (i, 0)),
        ),
        compiler_params=pltpu.CompilerParams(
            dimension_semantics=("parallel",)),
    )(xc, w1c, b1f, w2c, b2f, w3c, b3f, whc, bhf)

    out = out.astype(x.dtype)
    return out[:, :L], out[:, L:]


def init_params(key, feat_dim, latent_size, dtype=jnp.float32):
    """weights_init: Linear.weight ~ N(0, 0.02), Linear.bias = 0."""
    d0 = feat_dim
    d1 = feat_dim // 2
    d2 = latent_size * 2
    shapes = [(d0, d0), (d0, d1), (d1, d2), (d2, latent_size), (d2, latent_size)]
    keys = jax.random.split(key, len(shapes))
    params = []
    for k, (din, dout) in zip(keys, shapes):
        w = (0.02 * jax.random.normal(k, (din, dout))).astype(dtype)
        b = jnp.zeros((1, dout), dtype=dtype)
        params.extend([w, b])
    return tuple(params)


def reference_forward(x, params, compute_dtype=jnp.bfloat16):
    """Pure-JAX reference with the same bf16-operand / f32-accumulate math."""
    (w1, b1, w2, b2, w3, b3, wm, bm, wv, bv) = params
    cdt = compute_dtype

    def lin(h, w, b):
        return (jnp.dot(h.astype(cdt), w.astype(cdt),
                        preferred_element_type=jnp.float32)
                + b.astype(jnp.float32))

    h = _lrelu(lin(x, w1, b1))
    h = _lrelu(lin(h, w2, b2))
    h = _lrelu(lin(h, w3, b3))
    return (lin(h, wm, bm).astype(x.dtype),
            lin(h, wv, bv).astype(x.dtype))


if __name__ == "__main__":
    # Shapes consistent with the module:
    #   feat_dim = cfg.MODEL.ROI_RELATION_HEAD.LAST_FEATS_DIM -> 256
    #   latent_size = cfg.MODEL.APFG_latent_size              -> 64
    # batch = 256 with tm = 128 -> 2 grid steps on the "parallel" axis.
    feat_dim = 256
    latent_size = 64
    batch = 256

    key = jax.random.PRNGKey(0)
    kx, kp = jax.random.split(key)
    x = jax.random.normal(kx, (batch, feat_dim), dtype=jnp.float32)
    params = init_params(kp, feat_dim, latent_size)

    means, log_vars = visual_encoder(x, params, tm=128)
    means = jax.block_until_ready(means)
    log_vars = jax.block_until_ready(log_vars)

    ref_means, ref_log_vars = reference_forward(x, params)
    assert means.shape == (batch, latent_size)
    assert log_vars.shape == (batch, latent_size)
    assert jnp.allclose(means, ref_means, atol=1e-3, rtol=1e-3)
    assert jnp.allclose(log_vars, ref_log_vars, atol=1e-3, rtol=1e-3)

    print("KERNEL_OK")
</pallas_src>

<mosaic_0001>
module attributes {stable_mosaic.version = 11 : i64} {
  func.func @visual_encoder_kernel(%arg0: i32, %arg1: memref<128x256xbf16, #tpu.memory_space<vmem>>, %arg2: memref<256x256xbf16, #tpu.memory_space<vmem>>, %arg3: memref<1x256xf32, #tpu.memory_space<vmem>>, %arg4: memref<256x128xbf16, #tpu.memory_space<vmem>>, %arg5: memref<1x128xf32, #tpu.memory_space<vmem>>, %arg6: memref<128x128xbf16, #tpu.memory_space<vmem>>, %arg7: memref<1x128xf32, #tpu.memory_space<vmem>>, %arg8: memref<128x128xbf16, #tpu.memory_space<vmem>>, %arg9: memref<1x128xf32, #tpu.memory_space<vmem>>, %arg10: memref<128x128xf32, #tpu.memory_space<vmem>>) attributes {dimension_semantics = [#tpu.dimension_semantics<parallel>], iteration_bounds = array<i64: 2>, scalar_prefetch = 0 : i64, scratch_operands = 0 : i64, tpu.core_type = #tpu.core_type<tc>, window_params = [{transform_indices = @transform_0, window_bounds = array<i64: 128, 256>}, {pipeline_mode = #tpu.pipeline_mode<synchronous>, transform_indices = @transform_1, window_bounds = array<i64: 256, 256>}, {pipeline_mode = #tpu.pipeline_mode<synchronous>, transform_indices = @transform_2, window_bounds = array<i64: 1, 256>}, {pipeline_mode = #tpu.pipeline_mode<synchronous>, transform_indices = @transform_3, window_bounds = array<i64: 256, 128>}, {pipeline_mode = #tpu.pipeline_mode<synchronous>, transform_indices = @transform_4, window_bounds = array<i64: 1, 128>}, {pipeline_mode = #tpu.pipeline_mode<synchronous>, transform_indices = @transform_5, window_bounds = array<i64: 128, 128>}, {pipeline_mode = #tpu.pipeline_mode<synchronous>, transform_indices = @transform_6, window_bounds = array<i64: 1, 128>}, {pipeline_mode = #tpu.pipeline_mode<synchronous>, transform_indices = @transform_7, window_bounds = array<i64: 128, 128>}, {pipeline_mode = #tpu.pipeline_mode<synchronous>, transform_indices = @transform_8, window_bounds = array<i64: 1, 128>}, {transform_indices = @transform_9, window_bounds = array<i64: 128, 128>}]} {
    %c0 = arith.constant 0 : index
    %c0_0 = arith.constant 0 : index
    %0 = vector.load %arg1[%c0, %c0_0] : memref<128x256xbf16, #tpu.memory_space<vmem>>, vector<128x256xbf16>
    %c0_1 = arith.constant 0 : index
    %c0_2 = arith.constant 0 : index
    %1 = vector.load %arg2[%c0_1, %c0_2] : memref<256x256xbf16, #tpu.memory_space<vmem>>, vector<256x256xbf16>
    %cst = arith.constant dense<0.000000e+00> : vector<128x256xf32>
    %2 = tpu.matmul %0, %1, %cst {dimension_numbers = #tpu.dot_dimension_numbers<[1], [0], [0], [1], [0, 0, 1, 1], [], []>} : vector<128x256xbf16>, vector<256x256xbf16>, vector<128x256xf32> -> vector<128x256xf32>
    %c0_3 = arith.constant 0 : index
    %c0_4 = arith.constant 0 : index
    %3 = vector.load %arg3[%c0_3, %c0_4] : memref<1x256xf32, #tpu.memory_space<vmem>>, vector<1x256xf32>
    %4 = vector.broadcast %3 : vector<1x256xf32> to vector<128x256xf32>
    %5 = arith.addf %2, %4 : vector<128x256xf32>
    %cst_5 = arith.constant 0.000000e+00 : f32
    %6 = vector.broadcast %cst_5 : f32 to vector<128x256xf32>
    %7 = arith.cmpf ogt, %5, %6 : vector<128x256xf32>
    %cst_6 = arith.constant 1.000000e-01 : f32
    %8 = vector.broadcast %cst_6 : f32 to vector<128x256xf32>
    %9 = arith.mulf %8, %5 : vector<128x256xf32>
    %10 = arith.select %7, %5, %9 : vector<128x256xi1>, vector<128x256xf32>
    %11 = arith.truncf %10 : vector<128x256xf32> to vector<128x256xbf16>
    %c0_7 = arith.constant 0 : index
    %c0_8 = arith.constant 0 : index
    %12 = vector.load %arg4[%c0_7, %c0_8] : memref<256x128xbf16, #tpu.memory_space<vmem>>, vector<256x128xbf16>
    %cst_9 = arith.constant dense<0.000000e+00> : vector<128x128xf32>
    %13 = tpu.matmul %11, %12, %cst_9 {dimension_numbers = #tpu.dot_dimension_numbers<[1], [0], [0], [1], [0, 0, 1, 1], [], []>} : vector<128x256xbf16>, vector<256x128xbf16>, vector<128x128xf32> -> vector<128x128xf32>
    %c0_10 = arith.constant 0 : index
    %c0_11 = arith.constant 0 : index
    %14 = vector.load %arg5[%c0_10, %c0_11] : memref<1x128xf32, #tpu.memory_space<vmem>>, vector<1x128xf32>
    %15 = vector.broadcast %14 : vector<1x128xf32> to vector<128x128xf32>
    %16 = arith.addf %13, %15 : vector<128x128xf32>
    %cst_12 = arith.constant 0.000000e+00 : f32
    %17 = vector.broadcast %cst_12 : f32 to vector<128x128xf32>
    %18 = arith.cmpf ogt, %16, %17 : vector<128x128xf32>
    %cst_13 = arith.constant 1.000000e-01 : f32
    %19 = vector.broadcast %cst_13 : f32 to vector<128x128xf32>
    %20 = arith.mulf %19, %16 : vector<128x128xf32>
    %21 = arith.select %18, %16, %20 : vector<128x128xi1>, vector<128x128xf32>
    %22 = arith.truncf %21 : vector<128x128xf32> to vector<128x128xbf16>
    %c0_14 = arith.constant 0 : index
    %c0_15 = arith.constant 0 : index
    %23 = vector.load %arg6[%c0_14, %c0_15] : memref<128x128xbf16, #tpu.memory_space<vmem>>, vector<128x128xbf16>
    %cst_16 = arith.constant dense<0.000000e+00> : vector<128x128xf32>
    %24 = tpu.matmul %22, %23, %cst_16 {dimension_numbers = #tpu.dot_dimension_numbers<[1], [0], [0], [1], [0, 0, 1, 1], [], []>} : vector<128x128xbf16>, vector<128x128xbf16>, vector<128x128xf32> -> vector<128x128xf32>
    %c0_17 = arith.constant 0 : index
    %c0_18 = arith.constant 0 : index
    %25 = vector.load %arg7[%c0_17, %c0_18] : memref<1x128xf32, #tpu.memory_space<vmem>>, vector<1x128xf32>
    %26 = vector.broadcast %25 : vector<1x128xf32> to vector<128x128xf32>
    %27 = arith.addf %24, %26 : vector<128x128xf32>
    %cst_19 = arith.constant 0.000000e+00 : f32
    %28 = vector.broadcast %cst_19 : f32 to vector<128x128xf32>
    %29 = arith.cmpf ogt, %27, %28 : vector<128x128xf32>
    %cst_20 = arith.constant 1.000000e-01 : f32
    %30 = vector.broadcast %cst_20 : f32 to vector<128x128xf32>
    %31 = arith.mulf %30, %27 : vector<128x128xf32>
    %32 = arith.select %29, %27, %31 : vector<128x128xi1>, vector<128x128xf32>
    %33 = arith.truncf %32 : vector<128x128xf32> to vector<128x128xbf16>
    %c0_21 = arith.constant 0 : index
    %c0_22 = arith.constant 0 : index
    %34 = vector.load %arg8[%c0_21, %c0_22] : memref<128x128xbf16, #tpu.memory_space<vmem>>, vector<128x128xbf16>
    %cst_23 = arith.constant dense<0.000000e+00> : vector<128x128xf32>
    %35 = tpu.matmul %33, %34, %cst_23 {dimension_numbers = #tpu.dot_dimension_numbers<[1], [0], [0], [1], [0, 0, 1, 1], [], []>} : vector<128x128xbf16>, vector<128x128xbf16>, vector<128x128xf32> -> vector<128x128xf32>
    %c0_24 = arith.constant 0 : index
    %c0_25 = arith.constant 0 : index
    %36 = vector.load %arg9[%c0_24, %c0_25] : memref<1x128xf32, #tpu.memory_space<vmem>>, vector<1x128xf32>
    %37 = vector.broadcast %36 : vector<1x128xf32> to vector<128x128xf32>
    %38 = arith.addf %35, %37 : vector<128x128xf32>
    %c0_26 = arith.constant 0 : index
    %c0_27 = arith.constant 0 : index
    %39 = vector.load %arg10[%c0_26, %c0_27] : memref<128x128xf32, #tpu.memory_space<vmem>>, vector<128x128xf32>
    tpu.vector_store %arg10[%c0_26, %c0_27], %38 {strides = array<i32>} : memref<128x128xf32, #tpu.memory_space<vmem>>, vector<128x128xf32>,
    return
  }
  func.func @transform_0(%arg0: i32) -> (i32, i32) {
    %c0_i32 = arith.constant 0 : i32
    %c0_i32_0 = arith.constant 0 : i32
    return %arg0, %c0_i32 : i32, i32
  }
  func.func @transform_1(%arg0: i32) -> (i32, i32) {
    %c0_i32 = arith.constant 0 : i32
    %c0_i32_0 = arith.constant 0 : i32
    %c0_i32_1 = arith.constant 0 : i32
    return %c0_i32, %c0_i32_0 : i32, i32
  }
  func.func @transform_2(%arg0: i32) -> (i32, i32) {
    %c0_i32 = arith.constant 0 : i32
    %c0_i32_0 = arith.constant 0 : i32
    %c0_i32_1 = arith.constant 0 : i32
    return %c0_i32, %c0_i32_0 : i32, i32
  }
  func.func @transform_3(%arg0: i32) -> (i32, i32) {
    %c0_i32 = arith.constant 0 : i32
    %c0_i32_0 = arith.constant 0 : i32
    %c0_i32_1 = arith.constant 0 : i32
    return %c0_i32, %c0_i32_0 : i32, i32
  }
  func.func @transform_4(%arg0: i32) -> (i32, i32) {
    %c0_i32 = arith.constant 0 : i32
    %c0_i32_0 = arith.constant 0 : i32
    %c0_i32_1 = arith.constant 0 : i32
    return %c0_i32, %c0_i32_0 : i32, i32
  }
  func.func @transform_5(%arg0: i32) -> (i32, i32) {
    %c0_i32 = arith.constant 0 : i32
    %c0_i32_0 = arith.constant 0 : i32
    %c0_i32_1 = arith.constant 0 : i32
    return %c0_i32, %c0_i32_0 : i32, i32
  }
  func.func @transform_6(%arg0: i32) -> (i32, i32) {
    %c0_i32 = arith.constant 0 : i32
    %c0_i32_0 = arith.constant 0 : i32
    %c0_i32_1 = arith.constant 0 : i32
    return %c0_i32, %c0_i32_0 : i32, i32
  }
  func.func @transform_7(%arg0: i32) -> (i32, i32) {
    %c0_i32 = arith.constant 0 : i32
    %c0_i32_0 = arith.constant 0 : i32
    %c0_i32_1 = arith.constant 0 : i32
    return %c0_i32, %c0_i32_0 : i32, i32
  }
  func.func @transform_8(%arg0: i32) -> (i32, i32) {
    %c0_i32 = arith.constant 0 : i32
    %c0_i32_0 = arith.constant 0 : i32
    %c0_i32_1 = arith.constant 0 : i32
    return %c0_i32, %c0_i32_0 : i32, i32
  }
  func.func @transform_9(%arg0: i32) -> (i32, i32) {
    %c0_i32 = arith.constant 0 : i32
    %c0_i32_0 = arith.constant 0 : i32
    return %arg0, %c0_i32 : i32, i32
  }
}

</mosaic_0001>

<llo_original>
// kernel: tpu_custom_call.1
$region0: #{tpu_custom_call.1}
  #allocation0 [shape = 'u32[]', space=smem, size = 0x4, offset = 0x4, fixed_abs, tag = 'smem constant byte address 0x4 - core index']
  #allocation1 [shape = 'u32[144,128]{1,0:T(1,128)}', space=vmem, size = 0x12000, scoped, tag = 'internal scratch']
  %s0 = inlined_call_operand.hbm [shape: bf16[256,256], index: 0, kind: input, shape index: {}]
  %s1 = inlined_call_operand.hbm [shape: bf16[256,256], index: 1, kind: input, shape index: {}]
  %s2 = inlined_call_operand.vmem [shape: f32[1,256], index: 2, kind: input, shape index: {}]
  %s3 = inlined_call_operand.hbm [shape: bf16[256,128], index: 3, kind: input, shape index: {}]
  %s4 = inlined_call_operand.vmem [shape: f32[1,128], index: 4, kind: input, shape index: {}]
  %s5 = inlined_call_operand.hbm [shape: bf16[128,128], index: 5, kind: input, shape index: {}]
  %s6 = inlined_call_operand.vmem [shape: f32[1,128], index: 6, kind: input, shape index: {}]
  %s7 = inlined_call_operand.hbm [shape: bf16[128,128], index: 7, kind: input, shape index: {}]
  %s8 = inlined_call_operand.vmem [shape: f32[1,128], index: 8, kind: input, shape index: {}]
  %s9 = inlined_call_operand.hbm [shape: f32[256,128], index: 9, kind: output, shape index: {}]
  %s10 = sld [smem:[#allocation0]]
  $region89: #{tpu_custom_call.1} parent=0
    _
  %s12 = ssub.s32 1, %s10
  %s13 = scalar_select 0, %s12, %s10
  $region1: #{tpu_custom_call.1} parent=0
    #allocation2 [shape = 'u8[131072]{0}', space=vmem, size = 0x20000, scoped, tag = 'input window, operand 0']
    #allocation3 [shape = 's32[2]{0}', space=sflag, size = 0x8, scoped, tag = 'scoped memory for tpu_custom_call.1']
    #allocation4 [shape = 's32[2]{0}', space=sflag, size = 0x8, scoped, tag = 'scoped memory for tpu_custom_call.1']
    #allocation5 [shape = 'u8[131072]{0}', space=vmem, size = 0x20000, scoped, tag = 'input window, operand 1, single buffered']
    #allocation6 [shape = 's32[1]{0}', space=sflag, size = 0x4, scoped, tag = 'scoped memory for tpu_custom_call.1']
    #allocation7 [shape = 'u8[65536]{0}', space=vmem, size = 0x10000, scoped, tag = 'input window, operand 3, single buffered']
    #allocation8 [shape = 'u8[32768]{0}', space=vmem, size = 0x8000, scoped, tag = 'input window, operand 5, single buffered']
    #allocation9 [shape = 's32[1]{0}', space=sflag, size = 0x4, scoped, tag = 'scoped memory for tpu_custom_call.1']
    #allocation10 [shape = 'u8[32768]{0}', space=vmem, size = 0x8000, scoped, tag = 'input window, operand 7, single buffered']
    #allocation11 [shape = 'u8[131072]{0}', space=vmem, size = 0x20000, scoped, tag = 'output window, operand 0']
    %14 = vsyncpa [#allocation3], 0
    %s15 = scalar_lea.sflag [#allocation3], 1
    %16 = vsyncpa %s15, 0
    %17 = vsyncpa [#allocation6], 0
    %18 = vsyncpa [#allocation9], 0
    %19 = vsyncpa [#allocation4], 0
    %s20 = scalar_lea.sflag [#allocation4], 1
    %21 = vsyncpa %s20, 0
    loop: start=0, step=1, limit=4
    $region2: #{tpu_custom_call.1} parent=1 // loop_pre_header
      _
    $region3: #{tpu_custom_call.1} parent=1 // loop_header
      %s23 = sphi 0, %s27
      %p24 = scmp.ge.s32.totalorder %s23, 4
      %s33 = sphi 0, %s35
      %s36 = sphi 0, %s33
      %s37 = sphi 0, %s36
      %s53 = sphi 0, %s37
      %s57 = sphi 0, %s57
      %s59 = sphi 0, %s57
      %s60 = sphi 0, %s59
      %s74 = sphi 0, %s60
      %s78 = sphi 0, %s78
      %s80 = sphi 0, %s78
      %s81 = sphi 0, %s80
      %s95 = sphi 0, %s81
      %s99 = sphi 0, %s99
      %s101 = sphi 0, %s99
      %s102 = sphi 0, %s101
      %s116 = sphi 0, %s102
      %s120 = sphi 0, %s120
      %s122 = sphi 0, %s120
      %s123 = sphi 0, %s122
      %s137 = sphi 0, %s123
      %s141 = sphi 0, %s141
      %s143 = sphi 0, %s141
      %s144 = sphi 0, %s143
      %s158 = sphi 0, %s144
      %s162 = sphi 0, %s162
      %s164 = sphi 0, %s162
      %s165 = sphi 0, %s164
      %s179 = sphi 0, %s165
      %s183 = sphi 0, %s183
      %s185 = sphi 0, %s183
      %s186 = sphi 0, %s185
      %s200 = sphi 0, %s186
      %s204 = sphi 0, %s204
      %s206 = sphi 0, %s204
      %s207 = sphi 0, %s206
      %s221 = sphi 0, %s207
      %s227 = sphi 0, %s229
      %s230 = sphi 0, %s227
      %s231 = sphi 0, %s230
      %s247 = sphi 0, %s231
    $region4: #{tpu_custom_call.1} parent=1 // loop_header_branch
      %26 = sbr.rel (%p24) target = $region8
    $region5: #{tpu_custom_call.1} parent=1 // loop_body
      %s28 = ssub.s32 %s23, 1
      %s29 = ssub.s32 %s23, 2
      %s30 = sadd.s32 %s23, 1
      %s31 = ssub.s32 %s23, %s30
      %p32 = scmp.eq.s32.totalorder %s31, 0
      %s34 = sadd.s32 %s33, 1
      %s35 = scalar_select %p32, %s33, %s34
      %p38 = pneg %p32
      %p39 = scmp.eq.s32.totalorder %s23, 1
      %p40 = por %p38, %p39
      %p41 = scmp.ne.s32.totalorder %s33, %s36
      %p42 = scmp.eq.s32.totalorder %s23, 0
      %p43 = por %p41, %p42
      %p44 = scmp.ne.s32.totalorder %s33, %s36
      %p45 = scmp.eq.s32.totalorder %s28, 1
      %p46 = por %p44, %p45
      %p47 = scmp.ne.s32.totalorder %s36, %s37
      %p48 = scmp.eq.s32.totalorder %s28, 0
      %p49 = por %p47, %p48
      %p50 = scmp.ne.s32.totalorder %s36, %s37
      %p51 = scmp.eq.s32.totalorder %s29, 1
      %p52 = por %p50, %p51
      %p54 = scmp.ne.s32.totalorder %s37, %s53
      %p55 = scmp.eq.s32.totalorder %s29, 0
      %p56 = por %p54, %p55
      %s58 = sadd.s32 %s57, 1
      %p61 = scmp.eq.s32.totalorder %s23, 1
      %p62 = scmp.ne.s32.totalorder %s57, %s59
      %p63 = scmp.eq.s32.totalorder %s23, 0
      %p64 = por %p62, %p63
      %p65 = scmp.ne.s32.totalorder %s57, %s59
      %p66 = scmp.eq.s32.totalorder %s28, 1
      %p67 = por %p65, %p66
      %p68 = scmp.ne.s32.totalorder %s59, %s60
      %p69 = scmp.eq.s32.totalorder %s28, 0
      %p70 = por %p68, %p69
      %p71 = scmp.ne.s32.totalorder %s59, %s60
      %p72 = scmp.eq.s32.totalorder %s29, 1
      %p73 = por %p71, %p72
      %p75 = scmp.ne.s32.totalorder %s60, %s74
      %p76 = scmp.eq.s32.totalorder %s29, 0
      %p77 = por %p75, %p76
      %s79 = sadd.s32 %s78, 1
      %p82 = scmp.eq.s32.totalorder %s23, 1
      %p83 = scmp.ne.s32.totalorder %s78, %s80
      %p84 = scmp.eq.s32.totalorder %s23, 0
      %p85 = por %p83, %p84
      %p86 = scmp.ne.s32.totalorder %s78, %s80
      %p87 = scmp.eq.s32.totalorder %s28, 1
      %p88 = por %p86, %p87
      %p89 = scmp.ne.s32.totalorder %s80, %s81
      %p90 = scmp.eq.s32.totalorder %s28, 0
      %p91 = por %p89, %p90
      %p92 = scmp.ne.s32.totalorder %s80, %s81
      %p93 = scmp.eq.s32.totalorder %s29, 1
      %p94 = por %p92, %p93
      %p96 = scmp.ne.s32.totalorder %s81, %s95
      %p97 = scmp.eq.s32.totalorder %s29, 0
      %p98 = por %p96, %p97
      %s100 = sadd.s32 %s99, 1
      %p103 = scmp.eq.s32.totalorder %s23, 1
      %p104 = scmp.ne.s32.totalorder %s99, %s101
      %p105 = scmp.eq.s32.totalorder %s23, 0
      %p106 = por %p104, %p105
      %p107 = scmp.ne.s32.totalorder %s99, %s101
      %p108 = scmp.eq.s32.totalorder %s28, 1
      %p109 = por %p107, %p108
      %p110 = scmp.ne.s32.totalorder %s101, %s102
      %p111 = scmp.eq.s32.totalorder %s28, 0
      %p112 = por %p110, %p111
      %p113 = scmp.ne.s32.totalorder %s101, %s102
      %p114 = scmp.eq.s32.totalorder %s29, 1
      %p115 = por %p113, %p114
      %p117 = scmp.ne.s32.totalorder %s102, %s116
      %p118 = scmp.eq.s32.totalorder %s29, 0
      %p119 = por %p117, %p118
      %s121 = sadd.s32 %s120, 1
      %p124 = scmp.eq.s32.totalorder %s23, 1
      %p125 = scmp.ne.s32.totalorder %s120, %s122
      %p126 = scmp.eq.s32.totalorder %s23, 0
      %p127 = por %p125, %p126
      %p128 = scmp.ne.s32.totalorder %s120, %s122
      %p129 = scmp.eq.s32.totalorder %s28, 1
      %p130 = por %p128, %p129
      %p131 = scmp.ne.s32.totalorder %s122, %s123
      %p132 = scmp.eq.s32.totalorder %s28, 0
      %p133 = por %p131, %p132
      %p134 = scmp.ne.s32.totalorder %s122, %s123
      %p135 = scmp.eq.s32.totalorder %s29, 1
      %p136 = por %p134, %p135
      %p138 = scmp.ne.s32.totalorder %s123, %s137
      %p139 = scmp.eq.s32.totalorder %s29, 0
      %p140 = por %p138, %p139
      %s142 = sadd.s32 %s141, 1
      %p145 = scmp.eq.s32.totalorder %s23, 1
      %p146 = scmp.ne.s32.totalorder %s141, %s143
      %p147 = scmp.eq.s32.totalorder %s23, 0
      %p148 = por %p146, %p147
      %p149 = scmp.ne.s32.totalorder %s141, %s143
      %p150 = scmp.eq.s32.totalorder %s28, 1
      %p151 = por %p149, %p150
      %p152 = scmp.ne.s32.totalorder %s143, %s144
      %p153 = scmp.eq.s32.totalorder %s28, 0
      %p154 = por %p152, %p153
      %p155 = scmp.ne.s32.totalorder %s143, %s144
      %p156 = scmp.eq.s32.totalorder %s29, 1
      %p157 = por %p155, %p156
      %p159 = scmp.ne.s32.totalorder %s144, %s158
      %p160 = scmp.eq.s32.totalorder %s29, 0
      %p161 = por %p159, %p160
      %s163 = sadd.s32 %s162, 1
      %p166 = scmp.eq.s32.totalorder %s23, 1
      %p167 = scmp.ne.s32.totalorder %s162, %s164
      %p168 = scmp.eq.s32.totalorder %s23, 0
      %p169 = por %p167, %p168
      %p170 = scmp.ne.s32.totalorder %s162, %s164
      %p171 = scmp.eq.s32.totalorder %s28, 1
      %p172 = por %p170, %p171
      %p173 = scmp.ne.s32.totalorder %s164, %s165
      %p174 = scmp.eq.s32.totalorder %s28, 0
      %p175 = por %p173, %p174
      %p176 = scmp.ne.s32.totalorder %s164, %s165
      %p177 = scmp.eq.s32.totalorder %s29, 1
      %p178 = por %p176, %p177
      %p180 = scmp.ne.s32.totalorder %s165, %s179
      %p181 = scmp.eq.s32.totalorder %s29, 0
      %p182 = por %p180, %p181
      %s184 = sadd.s32 %s183, 1
      %p187 = scmp.eq.s32.totalorder %s23, 1
      %p188 = scmp.ne.s32.totalorder %s183, %s185
      %p189 = scmp.eq.s32.totalorder %s23, 0
      %p190 = por %p188, %p189
      %p191 = scmp.ne.s32.totalorder %s183, %s185
      %p192 = scmp.eq.s32.totalorder %s28, 1
      %p193 = por %p191, %p192
      %p194 = scmp.ne.s32.totalorder %s185, %s186
      %p195 = scmp.eq.s32.totalorder %s28, 0
      %p196 = por %p194, %p195
      %p197 = scmp.ne.s32.totalorder %s185, %s186
      %p198 = scmp.eq.s32.totalorder %s29, 1
      %p199 = por %p197, %p198
      %p201 = scmp.ne.s32.totalorder %s186, %s200
      %p202 = scmp.eq.s32.totalorder %s29, 0
      %p203 = por %p201, %p202
      %s205 = sadd.s32 %s204, 1
      %p208 = scmp.eq.s32.totalorder %s23, 1
      %p209 = scmp.ne.s32.totalorder %s204, %s206
      %p210 = scmp.eq.s32.totalorder %s23, 0
      %p211 = por %p209, %p210
      %p212 = scmp.ne.s32.totalorder %s204, %s206
      %p213 = scmp.eq.s32.totalorder %s28, 1
      %p214 = por %p212, %p213
      %p215 = scmp.ne.s32.totalorder %s206, %s207
      %p216 = scmp.eq.s32.totalorder %s28, 0
      %p217 = por %p215, %p216
      %p218 = scmp.ne.s32.totalorder %s206, %s207
      %p219 = scmp.eq.s32.totalorder %s29, 1
      %p220 = por %p218, %p219
      %p222 = scmp.ne.s32.totalorder %s207, %s221
      %p223 = scmp.eq.s32.totalorder %s29, 0
      %p224 = por %p222, %p223
      %s225 = ssub.s32 %s23, %s30
      %p226 = scmp.eq.s32.totalorder %s225, 0
      %s228 = sadd.s32 %s227, 1
      %s229 = scalar_select %p226, %s227, %s228
      %p232 = pneg %p226
      %p233 = scmp.eq.s32.totalorder %s23, 1
      %p234 = por %p232, %p233
      %p235 = scmp.ne.s32.totalorder %s227, %s230
      %p236 = scmp.eq.s32.totalorder %s23, 0
      %p237 = por %p235, %p236
      %p238 = scmp.ne.s32.totalorder %s227, %s230
      %p239 = scmp.eq.s32.totalorder %s28, 1
      %p240 = por %p238, %p239
      %p241 = scmp.ne.s32.totalorder %s230, %s231
      %p242 = scmp.eq.s32.totalorder %s28, 0
      %p243 = por %p241, %p242
      %p244 = scmp.ne.s32.totalorder %s230, %s231
      %p245 = scmp.eq.s32.totalorder %s29, 1
      %p246 = por %p244, %p245
      %p248 = scmp.ne.s32.totalorder %s231, %s247
      %p249 = scmp.eq.s32.totalorder %s29, 0
      %p250 = por %p248, %p249
      %p251 = scmp.le.s32.totalorder 1, %s23
      %p252 = scmp.lt.s32.totalorder %s23, 3
      %p253 = pnand %p251, %p252
      %p254 = pneg %p253
      // Predicated region
      $region9: #{tpu_custom_call.1} parent=5 // pred_check
        _
      $region10: #{tpu_custom_call.1} parent=5 // pred_check_branch
        %256 = sbr.rel (%p253) target = $region12
      $region11: #{tpu_custom_call.1} parent=5 // pred_region
        %s257 = ssub.s32 %s23, 1
        // Predicated region
        $region13: #{tpu_custom_call.1} parent=11 // pred_check
          %p258 = pneg %p70
        $region14: #{tpu_custom_call.1} parent=11 // pred_check_branch
          %260 = sbr.rel (%p258) target = $region16
        $region15: #{tpu_custom_call.1} parent=11 // pred_region
          %s262 = ssub.s32 4096, 4096
          %263 = vsyncadd [#allocation6], %s262
          %s264 = sshll.u32 [#allocation5], 4
          %s265 = int_to_ptr.vmem [resolvable:$true] %s264
          %270 = dma.hbm_to_vmem [thread:$0]  %s1, 4096, %s265, [#allocation6], 128, 128, 8
        $region16: #{tpu_custom_call.1} parent=11 // pred_fallthru
          _
        // Predicated region
        $region17: #{tpu_custom_call.1} parent=11 // pred_check
          %p271 = pneg %p91
        $region18: #{tpu_custom_call.1} parent=11 // pred_check_branch
          %273 = sbr.rel (%p271) target = $region20
        $region19: #{tpu_custom_call.1} parent=11 // pred_region
          _
        $region20: #{tpu_custom_call.1} parent=11 // pred_fallthru
          _
        // Predicated region
        $region21: #{tpu_custom_call.1} parent=11 // pred_check
          %p274 = pneg %p112
        $region22: #{tpu_custom_call.1} parent=11 // pred_check_branch
          %276 = sbr.rel (%p274) target = $region24
        $region23: #{tpu_custom_call.1} parent=11 // pred_region
          %s278 = ssub.s32 2048, 2048
          %279 = vsyncadd [#allocation6], %s278
          %s280 = sshll.u32 [#allocation7], 4
          %s281 = int_to_ptr.vmem [resolvable:$true] %s280
          %286 = dma.hbm_to_vmem [thread:$0]  %s3, 2048, %s281, [#allocation6], 64, 64, 4
        $region24: #{tpu_custom_call.1} parent=11 // pred_fallthru
          _
        // Predicated region
        $region25: #{tpu_custom_call.1} parent=11 // pred_check
          %p287 = pneg %p133
        $region26: #{tpu_custom_call.1} parent=11 // pred_check_branch
          %289 = sbr.rel (%p287) target = $region28
        $region27: #{tpu_custom_call.1} parent=11 // pred_region
          _
        $region28: #{tpu_custom_call.1} parent=11 // pred_fallthru
          _
        // Predicated region
        $region29: #{tpu_custom_call.1} parent=11 // pred_check
          %p290 = pneg %p154
        $region30: #{tpu_custom_call.1} parent=11 // pred_check_branch
          %292 = sbr.rel (%p290) target = $region32
        $region31: #{tpu_custom_call.1} parent=11 // pred_region
          %s294 = ssub.s32 1024, 1024
          %295 = vsyncadd [#allocation9], %s294
          %s296 = sshll.u32 [#allocation8], 4
          %s297 = int_to_ptr.vmem [resolvable:$true] %s296
          %302 = dma.hbm_to_vmem [thread:$0]  %s5, 1024, %s297, [#allocation9], 64, 64, 4
        $region32: #{tpu_custom_call.1} parent=11 // pred_fallthru
          _
        // Predicated region
        $region33: #{tpu_custom_call.1} parent=11 // pred_check
          %p303 = pneg %p175
        $region34: #{tpu_custom_call.1} parent=11 // pred_check_branch
          %305 = sbr.rel (%p303) target = $region36
        $region35: #{tpu_custom_call.1} parent=11 // pred_region
          _
        $region36: #{tpu_custom_call.1} parent=11 // pred_fallthru
          _
        // Predicated region
        $region37: #{tpu_custom_call.1} parent=11 // pred_check
          %p306 = pneg %p196
        $region38: #{tpu_custom_call.1} parent=11 // pred_check_branch
          %308 = sbr.rel (%p306) target = $region40
        $region39: #{tpu_custom_call.1} parent=11 // pred_region
          %s310 = ssub.s32 1024, 1024
          %311 = vsyncadd [#allocation9], %s310
          %s312 = sshll.u32 [#allocation10], 4
          %s313 = int_to_ptr.vmem [resolvable:$true] %s312
          %318 = dma.hbm_to_vmem [thread:$0]  %s7, 1024, %s313, [#allocation9], 64, 64, 4
        $region40: #{tpu_custom_call.1} parent=11 // pred_fallthru
          _
        // Predicated region
        $region41: #{tpu_custom_call.1} parent=11 // pred_check
          %p319 = pneg %p217
        $region42: #{tpu_custom_call.1} parent=11 // pred_check_branch
          %321 = sbr.rel (%p319) target = $region44
        $region43: #{tpu_custom_call.1} parent=11 // pred_region
          _
        $region44: #{tpu_custom_call.1} parent=11 // pred_fallthru
          _
      $region12: #{tpu_custom_call.1} parent=5 // pred_fallthru
        _
      %p322 = scmp.lt.s32.totalorder %s23, 2
      // Predicated region
      $region45: #{tpu_custom_call.1} parent=5 // pred_check
        %p323 = pneg %p322
      $region46: #{tpu_custom_call.1} parent=5 // pred_check_branch
        %325 = sbr.rel (%p323) target = $region48
      $region47: #{tpu_custom_call.1} parent=5 // pred_region
        // Predicated region
        $region49: #{tpu_custom_call.1} parent=47 // pred_check
          %p326 = pneg %p43
        $region50: #{tpu_custom_call.1} parent=47 // pred_check_branch
          %328 = sbr.rel (%p326) target = $region52
        $region51: #{tpu_custom_call.1} parent=47 // pred_region
          %s329 = sand.u32 %s33, 1
          %s330 = scalar_lea.sflag [#allocation3], %s329
          %s331 = sand.u32 %s33, 1
          %s332 = smul.addr %s331, 128
          %s333 = scalar_lea.vmem [#allocation2], %s332
          %s334 = smul.u32 16, %s23
          %s336 = ssub.s32 2048, 2048
          %337 = vsyncadd %s330, %s336
          %s338 = smul.addr %s334, 2
          %s339 = smul.addr %s338, 64
          %s340 = scalar_lea.hbm %s0, %s339
          %s341 = sshll.u32 %s333, 4
          %s342 = int_to_ptr.vmem [resolvable:$true] %s341
          %347 = dma.hbm_to_vmem [thread:$0]  %s340, 2048, %s342, %s330, 128, 128, 8
        $region52: #{tpu_custom_call.1} parent=47 // pred_fallthru
          _
      $region48: #{tpu_custom_call.1} parent=5 // pred_fallthru
        _
      %p348 = scmp.le.s32.totalorder 1, %s23
      %p349 = scmp.lt.s32.totalorder %s23, 3
      %p350 = pnand %p348, %p349
      %p351 = pneg %p350
      // Predicated region
      $region53: #{tpu_custom_call.1} parent=5 // pred_check
        _
      $region54: #{tpu_custom_call.1} parent=5 // pred_check_branch
        %353 = sbr.rel (%p350) target = $region56
      $region55: #{tpu_custom_call.1} parent=5 // pred_region
        %s354 = ssub.s32 %s23, 1
        %s355 = sand.u32 %s36, 1
        %s356 = scalar_lea.sflag [#allocation3], %s355
        %s357 = sand.u32 %s36, 1
        %s358 = smul.addr %s357, 128
        %s359 = scalar_lea.vmem [#allocation2], %s358
        // Predicated region
        $region57: #{tpu_custom_call.1} parent=55 // pred_check
          %p360 = pneg %p49
        $region58: #{tpu_custom_call.1} parent=55 // pred_check_branch
          %362 = sbr.rel (%p360) target = $region60
        $region59: #{tpu_custom_call.1} parent=55 // pred_region
          %363 = dma.done %s356, 2048
        $region60: #{tpu_custom_call.1} parent=55 // pred_fallthru
          _
        // Predicated region
        $region61: #{tpu_custom_call.1} parent=55 // pred_check
          %p364 = pneg %p70
        $region62: #{tpu_custom_call.1} parent=55 // pred_check_branch
          %366 = sbr.rel (%p364) target = $region64
        $region63: #{tpu_custom_call.1} parent=55 // pred_region
          %367 = dma.done [#allocation6], 4096
        $region64: #{tpu_custom_call.1} parent=55 // pred_fallthru
          _
        // Predicated region
        $region65: #{tpu_custom_call.1} parent=55 // pred_check
          %p368 = pneg %p112
        $region66: #{tpu_custom_call.1} parent=55 // pred_check_branch
          %370 = sbr.rel (%p368) target = $region68
        $region67: #{tpu_custom_call.1} parent=55 // pred_region
          %371 = dma.done [#allocation6], 2048
        $region68: #{tpu_custom_call.1} parent=55 // pred_fallthru
          _
        // Predicated region
        $region69: #{tpu_custom_call.1} parent=55 // pred_check
          %p372 = pneg %p154
        $region70: #{tpu_custom_call.1} parent=55 // pred_check_branch
          %374 = sbr.rel (%p372) target = $region72
        $region71: #{tpu_custom_call.1} parent=55 // pred_region
          %375 = dma.done [#allocation9], 1024
        $region72: #{tpu_custom_call.1} parent=55 // pred_fallthru
          _
        // Predicated region
        $region73: #{tpu_custom_call.1} parent=55 // pred_check
          %p376 = pneg %p196
        $region74: #{tpu_custom_call.1} parent=55 // pred_check_branch
          %378 = sbr.rel (%p376) target = $region76
        $region75: #{tpu_custom_call.1} parent=55 // pred_region
          %379 = dma.done [#allocation9], 1024
        $region76: #{tpu_custom_call.1} parent=55 // pred_fallthru
          _
        %s380 = sand.u32 %s36, 1
        %s381 = scalar_lea.sflag [#allocation3], %s380
        %s382 = sand.u32 %s36, 1
        %s383 = smul.addr %s382, 128
        %s384 = scalar_lea.vmem [#allocation2], %s383
        %p385 = pneg %p49
        %p386 = pneg %p46
        %p387 = pneg %p70
        %p388 = pneg %p67
        %p389 = pneg %p91
        %p390 = pneg %p88
        %p391 = pneg %p112
        %p392 = pneg %p109
        %p393 = pneg %p133
        %p394 = pneg %p130
        %p395 = pneg %p154
        %p396 = pneg %p151
        %p397 = pneg %p175
        %p398 = pneg %p172
        %p399 = pneg %p196
        %p400 = pneg %p193
        %p401 = pneg %p217
        %p402 = pneg %p214
        %p403 = pneg %p243
        %p404 = pneg %p240
        %s405 = sand.u32 %s230, 1
        %s406 = scalar_lea.sflag [#allocation4], %s405
        %s407 = sand.u32 %s230, 1
        %s408 = smul.addr %s407, 128
        %s409 = scalar_lea.vmem [#allocation11], %s408
        %s410 = smul.u32 16, %s28
        %s411 = smul.u32 16, %s28
        %v413 = vld [vmem:[%s359] sm:$0xff]
        %v414 = vld [vmem:[%s359 + $0x8] sm:$0xff]
        %v415 = vld [vmem:[%s359 + $0x10] sm:$0xff]
        %v416 = vld [vmem:[%s359 + $0x18] sm:$0xff]
        %v417 = vld [vmem:[%s359 + $0x20] sm:$0xff]
        %v418 = vld [vmem:[%s359 + $0x28] sm:$0xff]
        %v419 = vld [vmem:[%s359 + $0x30] sm:$0xff]
        %v420 = vld [vmem:[%s359 + $0x38] sm:$0xff]
        %v421 = vld [vmem:[%s359 + $0x40] sm:$0xff]
        %v422 = vld [vmem:[%s359 + $0x48] sm:$0xff]
        %v423 = vld [vmem:[%s359 + $0x50] sm:$0xff]
        %v424 = vld [vmem:[%s359 + $0x58] sm:$0xff]
        %v425 = vld [vmem:[%s359 + $0x60] sm:$0xff]
        %v426 = vld [vmem:[%s359 + $0x68] sm:$0xff]
        %v427 = vld [vmem:[%s359 + $0x70] sm:$0xff]
        %v428 = vld [vmem:[%s359 + $0x78] sm:$0xff]
        %v429 = vld [vmem:[#allocation5] sm:$0xff]
        %v430 = vld [vmem:[#allocation5 + $0x8] sm:$0xff]
        %v431 = vld [vmem:[#allocation5 + $0x10] sm:$0xff]
        %v432 = vld [vmem:[#allocation5 + $0x18] sm:$0xff]
        %v433 = vld [vmem:[#allocation5 + $0x20] sm:$0xff]
        %v434 = vld [vmem:[#allocation5 + $0x28] sm:$0xff]
        %v435 = vld [vmem:[#allocation5 + $0x30] sm:$0xff]
        %v436 = vld [vmem:[#allocation5 + $0x38] sm:$0xff]
        %v437 = vld [vmem:[#allocation5 + $0x40] sm:$0xff]
        %v438 = vld [vmem:[#allocation5 + $0x48] sm:$0xff]
        %v439 = vld [vmem:[#allocation5 + $0x50] sm:$0xff]
        %v440 = vld [vmem:[#allocation5 + $0x58] sm:$0xff]
        %v441 = vld [vmem:[#allocation5 + $0x60] sm:$0xff]
        %v442 = vld [vmem:[#allocation5 + $0x68] sm:$0xff]
        %v443 = vld [vmem:[#allocation5 + $0x70] sm:$0xff]
        %v444 = vld [vmem:[#allocation5 + $0x78] sm:$0xff]
        %v445 = vld [vmem:[#allocation5 + $0x80] sm:$0xff]
        %v446 = vld [vmem:[#allocation5 + $0x88] sm:$0xff]
        %v447 = vld [vmem:[#allocation5 + $0x90] sm:$0xff]
        %v448 = vld [vmem:[#allocation5 + $0x98] sm:$0xff]
        %v449 = vld [vmem:[#allocation5 + $0xa0] sm:$0xff]
        %v450 = vld [vmem:[#allocation5 + $0xa8] sm:$0xff]
        %v451 = vld [vmem:[#allocation5 + $0xb0] sm:$0xff]
        %v452 = vld [vmem:[#allocation5 + $0xb8] sm:$0xff]
        %v453 = vld [vmem:[#allocation5 + $0xc0] sm:$0xff]
        %v454 = vld [vmem:[#allocation5 + $0xc8] sm:$0xff]
        %v455 = vld [vmem:[#allocation5 + $0xd0] sm:$0xff]
        %v456 = vld [vmem:[#allocation5 + $0xd8] sm:$0xff]
        %v457 = vld [vmem:[#allocation5 + $0xe0] sm:$0xff]
        %v458 = vld [vmem:[#allocation5 + $0xe8] sm:$0xff]
        %v459 = vld [vmem:[#allocation5 + $0xf0] sm:$0xff]
        %v460 = vld [vmem:[#allocation5 + $0xf8] sm:$0xff]
        %v461 = vld [vmem:[%s2] sm:$0x3]
        %v463 = vlaneseq
        %v464 = vshrl.u32 %v463, 7
        %v465 = vsub.s32 0, %v464
        %v466 = vrot.slane %v461, %v465
        %v467 = vlaneseq
        %v468 = vshrl.u32 %v467, 7
        %v469 = vsub.s32 1, %v468
        %v470 = vrot.slane %v461, %v469
        %v489 = vunpack.c.l.b16 %v413
        %v490 = vunpack.c.h.b16 %v413
        %v491 = vunpack.c.l.b16 %v414
        %v492 = vunpack.c.h.b16 %v414
        %v493 = vunpack.c.l.b16 %v415
        %v494 = vunpack.c.h.b16 %v415
        %v495 = vunpack.c.l.b16 %v416
        %v496 = vunpack.c.h.b16 %v416
        %v497 = vunpack.c.l.b16 %v417
        %v498 = vunpack.c.h.b16 %v417
        %v499 = vunpack.c.l.b16 %v418
        %v500 = vunpack.c.h.b16 %v418
        %v501 = vunpack.c.l.b16 %v419
        %v502 = vunpack.c.h.b16 %v419
        %v503 = vunpack.c.l.b16 %v420
        %v504 = vunpack.c.h.b16 %v420
        %v505 = vunpack.c.l.b16 %v421
        %v506 = vunpack.c.h.b16 %v421
        %v507 = vunpack.c.l.b16 %v422
        %v508 = vunpack.c.h.b16 %v422
        %v509 = vunpack.c.l.b16 %v423
        %v510 = vunpack.c.h.b16 %v423
        %v511 = vunpack.c.l.b16 %v424
        %v512 = vunpack.c.h.b16 %v424
        %v513 = vunpack.c.l.b16 %v425
        %v514 = vunpack.c.h.b16 %v425
        %v515 = vunpack.c.l.b16 %v426
        %v516 = vunpack.c.h.b16 %v426
        %v517 = vunpack.c.l.b16 %v427
        %v518 = vunpack.c.h.b16 %v427
        %v519 = vunpack.c.l.b16 %v428
        %v520 = vunpack.c.h.b16 %v428
        %v521 = vpack.c.b16 %v491, %v489
        %v522 = vpack.c.b16 %v492, %v490
        %v523 = vpack.c.b16 %v495, %v493
        %v524 = vpack.c.b16 %v496, %v494
        %v525 = vpack.c.b16 %v499, %v497
        %v526 = vpack.c.b16 %v500, %v498
        %v527 = vpack.c.b16 %v503, %v501
        %v528 = vpack.c.b16 %v504, %v502
        %v529 = vpack.c.b16 %v507, %v505
        %v530 = vpack.c.b16 %v508, %v506
        %v531 = vpack.c.b16 %v511, %v509
        %v532 = vpack.c.b16 %v512, %v510
        %v533 = vpack.c.b16 %v515, %v513
        %v534 = vpack.c.b16 %v516, %v514
        %v535 = vpack.c.b16 %v519, %v517
        %v536 = vpack.c.b16 %v520, %v518
        %v585 = vunpack.c.l.b16 %v429
        %v586 = vunpack.c.h.b16 %v429
        %v587 = vunpack.c.l.b16 %v430
        %v588 = vunpack.c.h.b16 %v430
        %v589 = vunpack.c.l.b16 %v431
        %v590 = vunpack.c.h.b16 %v431
        %v591 = vunpack.c.l.b16 %v432
        %v592 = vunpack.c.h.b16 %v432
        %v593 = vunpack.c.l.b16 %v433
        %v594 = vunpack.c.h.b16 %v433
        %v595 = vunpack.c.l.b16 %v434
        %v596 = vunpack.c.h.b16 %v434
        %v597 = vunpack.c.l.b16 %v435
        %v598 = vunpack.c.h.b16 %v435
        %v599 = vunpack.c.l.b16 %v436
        %v600 = vunpack.c.h.b16 %v436
        %v601 = vunpack.c.l.b16 %v437
        %v602 = vunpack.c.h.b16 %v437
        %v603 = vunpack.c.l.b16 %v438
        %v604 = vunpack.c.h.b16 %v438
        %v605 = vunpack.c.l.b16 %v439
        %v606 = vunpack.c.h.b16 %v439
        %v607 = vunpack.c.l.b16 %v440
        %v608 = vunpack.c.h.b16 %v440
        %v609 = vunpack.c.l.b16 %v441
        %v610 = vunpack.c.h.b16 %v441
        %v611 = vunpack.c.l.b16 %v442
        %v612 = vunpack.c.h.b16 %v442
        %v613 = vunpack.c.l.b16 %v443
        %v614 = vunpack.c.h.b16 %v443
        %v615 = vunpack.c.l.b16 %v444
        %v616 = vunpack.c.h.b16 %v444
        %v617 = vunpack.c.l.b16 %v445
        %v618 = vunpack.c.h.b16 %v445
        %v619 = vunpack.c.l.b16 %v446
        %v620 = vunpack.c.h.b16 %v446
        %v621 = vunpack.c.l.b16 %v447
        %v622 = vunpack.c.h.b16 %v447
        %v623 = vunpack.c.l.b16 %v448
        %v624 = vunpack.c.h.b16 %v448
        %v625 = vunpack.c.l.b16 %v449
        %v626 = vunpack.c.h.b16 %v449
        %v627 = vunpack.c.l.b16 %v450
        %v628 = vunpack.c.h.b16 %v450
        %v629 = vunpack.c.l.b16 %v451
        %v630 = vunpack.c.h.b16 %v451
        %v631 = vunpack.c.l.b16 %v452
        %v632 = vunpack.c.h.b16 %v452
        %v633 = vunpack.c.l.b16 %v453
        %v634 = vunpack.c.h.b16 %v453
        %v635 = vunpack.c.l.b16 %v454
        %v636 = vunpack.c.h.b16 %v454
        %v637 = vunpack.c.l.b16 %v455
        %v638 = vunpack.c.h.b16 %v455
        %v639 = vunpack.c.l.b16 %v456
        %v640 = vunpack.c.h.b16 %v456
        %v641 = vunpack.c.l.b16 %v457
        %v642 = vunpack.c.h.b16 %v457
        %v643 = vunpack.c.l.b16 %v458
        %v644 = vunpack.c.h.b16 %v458
        %v645 = vunpack.c.l.b16 %v459
        %v646 = vunpack.c.h.b16 %v459
        %v647 = vunpack.c.l.b16 %v460
        %v648 = vunpack.c.h.b16 %v460
        %v649 = vpack.c.b16 %v587, %v585
        %v650 = vpack.c.b16 %v588, %v586
        %v651 = vpack.c.b16 %v591, %v589
        %v652 = vpack.c.b16 %v592, %v590
        %v653 = vpack.c.b16 %v595, %v593
        %v654 = vpack.c.b16 %v596, %v594
        %v655 = vpack.c.b16 %v599, %v597
        %v656 = vpack.c.b16 %v600, %v598
        %v657 = vpack.c.b16 %v603, %v601
        %v658 = vpack.c.b16 %v604, %v602
        %v659 = vpack.c.b16 %v607, %v605
        %v660 = vpack.c.b16 %v608, %v606
        %v661 = vpack.c.b16 %v611, %v609
        %v662 = vpack.c.b16 %v612, %v610
        %v663 = vpack.c.b16 %v615, %v613
        %v664 = vpack.c.b16 %v616, %v614
        %v665 = vpack.c.b16 %v619, %v617
        %v666 = vpack.c.b16 %v620, %v618
        %v667 = vpack.c.b16 %v623, %v621
        %v668 = vpack.c.b16 %v624, %v622
        %v669 = vpack.c.b16 %v627, %v625
        %v670 = vpack.c.b16 %v628, %v626
        %v671 = vpack.c.b16 %v631, %v629
        %v672 = vpack.c.b16 %v632, %v630
        %v673 = vpack.c.b16 %v635, %v633
        %v674 = vpack.c.b16 %v636, %v634
        %v675 = vpack.c.b16 %v639, %v637
        %v676 = vpack.c.b16 %v640, %v638
        %v677 = vpack.c.b16 %v643, %v641
        %v678 = vpack.c.b16 %v644, %v642
        %v679 = vpack.c.b16 %v647, %v645
        %v680 = vpack.c.b16 %v648, %v646
        %713 = vmatprep.subr.bf16.mxu0 %v650
        %714 = vmatpush1.bf16.msra.mxu0 %v649
        %715 = vmatprep.subr.bf16.mxu0 %v652
        %716 = vmatpush1.bf16.msra.mxu0 %v651
        %717 = vmatprep.subr.bf16.mxu0 %v654
        %718 = vmatpush1.bf16.msra.mxu0 %v653
        %719 = vmatprep.subr.bf16.mxu0 %v656
        %720 = vmatpush1.bf16.msra.mxu0 %v655
        %721 = vmatprep.subr.bf16.mxu0 %v658
        %722 = vmatpush1.bf16.msra.mxu0 %v657
        %723 = vmatprep.subr.bf16.mxu0 %v660
        %724 = vmatpush1.bf16.msra.mxu0 %v659
        %725 = vmatprep.subr.bf16.mxu0 %v662
        %726 = vmatpush1.bf16.msra.mxu0 %v661
        %727 = vmatprep.subr.bf16.mxu0 %v664
        %728 = vmatpush1.bf16.msra.mxu0 %v663
        %729 = vmatprep.subr.bf16.mxu0 %v666
        %730 = vmatpush1.bf16.msra.mxu0 %v665
        %731 = vmatprep.subr.bf16.mxu0 %v668
        %732 = vmatpush1.bf16.msra.mxu0 %v667
        %733 = vmatprep.subr.bf16.mxu0 %v670
        %734 = vmatpush1.bf16.msra.mxu0 %v669
        %735 = vmatprep.subr.bf16.mxu0 %v672
        %736 = vmatpush1.bf16.msra.mxu0 %v671
        %737 = vmatprep.subr.bf16.mxu0 %v674
        %738 = vmatpush1.bf16.msra.mxu0 %v673
        %739 = vmatprep.subr.bf16.mxu0 %v676
        %740 = vmatpush1.bf16.msra.mxu0 %v675
        %741 = vmatprep.subr.bf16.mxu0 %v678
        %742 = vmatpush1.bf16.msra.mxu0 %v677
        %743 = vmatprep.subr.bf16.mxu0 %v680
        %744 = vmatpush1.bf16.msra.mxu0 %v679
        %745 = vmatprep.mubr.bf16.mxu0 %v522
        %746 = vmatmul.mubr.bf16.gmra.mrb[0].mxu0 %v521
        %v747 = vpop.f32.mrb[0].mxu0
        %v748 = vadd.f32 %v466, %v747
        %v749 = vpop.f32.mrb[0].mxu0
        %v750 = vadd.f32 %v470, %v749
        %v751 = vpop.f32.mrb[0].mxu0
        %v752 = vadd.f32 %v466, %v751
        %v753 = vpop.f32.mrb[0].mxu0
        %v754 = vadd.f32 %v470, %v753
        %755 = vmatprep.mubr.bf16.mxu0 %v524
        %756 = vmatmul.mubr.bf16.gmra.mrb[0].mxu0 %v523
        %v757 = vpop.f32.mrb[0].mxu0
        %v758 = vadd.f32 %v466, %v757
        %v759 = vpop.f32.mrb[0].mxu0
        %v760 = vadd.f32 %v470, %v759
        %v761 = vpop.f32.mrb[0].mxu0
        %v762 = vadd.f32 %v466, %v761
        %v763 = vpop.f32.mrb[0].mxu0
        %v764 = vadd.f32 %v470, %v763
        %765 = vmatprep.mubr.bf16.mxu0 %v526
        %766 = vmatmul.mubr.bf16.gmra.mrb[0].mxu0 %v525
        %v767 = vpop.f32.mrb[0].mxu0
        %v768 = vadd.f32 %v466, %v767
        %v769 = vpop.f32.mrb[0].mxu0
        %v770 = vadd.f32 %v470, %v769
        %v771 = vpop.f32.mrb[0].mxu0
        %v772 = vadd.f32 %v466, %v771
        %v773 = vpop.f32.mrb[0].mxu0
        %v774 = vadd.f32 %v470, %v773
        %775 = vmatprep.mubr.bf16.mxu0 %v528
        %776 = vmatmul.mubr.bf16.gmra.mrb[0].mxu0 %v527
        %v777 = vpop.f32.mrb[0].mxu0
        %v778 = vadd.f32 %v466, %v777
        %v779 = vpop.f32.mrb[0].mxu0
        %v780 = vadd.f32 %v470, %v779
        %v781 = vpop.f32.mrb[0].mxu0
        %v782 = vadd.f32 %v466, %v781
        %v783 = vpop.f32.mrb[0].mxu0
        %v784 = vadd.f32 %v470, %v783
        %785 = vmatprep.mubr.bf16.mxu0 %v530
        %786 = vmatmul.mubr.bf16.gmra.mrb[0].mxu0 %v529
        %v787 = vpop.f32.mrb[0].mxu0
        %v788 = vadd.f32 %v466, %v787
        %v789 = vpop.f32.mrb[0].mxu0
        %v790 = vadd.f32 %v470, %v789
        %v791 = vpop.f32.mrb[0].mxu0
        %v792 = vadd.f32 %v466, %v791
        %v793 = vpop.f32.mrb[0].mxu0
        %v794 = vadd.f32 %v470, %v793
        %795 = vmatprep.mubr.bf16.mxu0 %v532
        %796 = vmatmul.mubr.bf16.gmra.mrb[0].mxu0 %v531
        %v797 = vpop.f32.mrb[0].mxu0
        %v798 = vadd.f32 %v466, %v797
        %v799 = vpop.f32.mrb[0].mxu0
        %v800 = vadd.f32 %v470, %v799
        %v801 = vpop.f32.mrb[0].mxu0
        %v802 = vadd.f32 %v466, %v801
        %v803 = vpop.f32.mrb[0].mxu0
        %v804 = vadd.f32 %v470, %v803
        %805 = vmatprep.mubr.bf16.mxu0 %v534
        %806 = vmatmul.mubr.bf16.gmra.mrb[0].mxu0 %v533
        %v807 = vpop.f32.mrb[0].mxu0
        %v808 = vadd.f32 %v466, %v807
        %v809 = vpop.f32.mrb[0].mxu0
        %v810 = vadd.f32 %v470, %v809
        %v811 = vpop.f32.mrb[0].mxu0
        %v812 = vadd.f32 %v466, %v811
        %v813 = vpop.f32.mrb[0].mxu0
        %v814 = vadd.f32 %v470, %v813
        %815 = vmatprep.mubr.bf16.mxu0 %v536
        %816 = vmatmul.mubr.bf16.gmra.mrb[0].mxu0 %v535
        %v817 = vpop.f32.mrb[0].mxu0
        %v818 = vadd.f32 %v466, %v817
        %v819 = vpop.f32.mrb[0].mxu0
        %v820 = vadd.f32 %v470, %v819
        %v821 = vpop.f32.mrb[0].mxu0
        %v822 = vadd.f32 %v466, %v821
        %v823 = vpop.f32.mrb[0].mxu0
        %v824 = vadd.f32 %v470, %v823
        %825 = vdwg.mxu0
        %vm826 = vcmp.gt.f32.partialorder %v748, 0.0
        %vm827 = vcmp.gt.f32.partialorder %v750, 0.0
        %vm828 = vcmp.gt.f32.partialorder %v752, 0.0
        %vm829 = vcmp.gt.f32.partialorder %v754, 0.0
        %vm830 = vcmp.gt.f32.partialorder %v758, 0.0
        %vm831 = vcmp.gt.f32.partialorder %v760, 0.0
        %vm832 = vcmp.gt.f32.partialorder %v762, 0.0
        %vm833 = vcmp.gt.f32.partialorder %v764, 0.0
        %vm834 = vcmp.gt.f32.partialorder %v768, 0.0
        %vm835 = vcmp.gt.f32.partialorder %v770, 0.0
        %vm836 = vcmp.gt.f32.partialorder %v772, 0.0
        %vm837 = vcmp.gt.f32.partialorder %v774, 0.0
        %vm838 = vcmp.gt.f32.partialorder %v778, 0.0
        %vm839 = vcmp.gt.f32.partialorder %v780, 0.0
        %vm840 = vcmp.gt.f32.partialorder %v782, 0.0
        %vm841 = vcmp.gt.f32.partialorder %v784, 0.0
        %vm842 = vcmp.gt.f32.partialorder %v788, 0.0
        %vm843 = vcmp.gt.f32.partialorder %v790, 0.0
        %vm844 = vcmp.gt.f32.partialorder %v792, 0.0
        %vm845 = vcmp.gt.f32.partialorder %v794, 0.0
        %vm846 = vcmp.gt.f32.partialorder %v798, 0.0
        %vm847 = vcmp.gt.f32.partialorder %v800, 0.0
        %vm848 = vcmp.gt.f32.partialorder %v802, 0.0
        %vm849 = vcmp.gt.f32.partialorder %v804, 0.0
        %vm850 = vcmp.gt.f32.partialorder %v808, 0.0
        %vm851 = vcmp.gt.f32.partialorder %v810, 0.0
        %vm852 = vcmp.gt.f32.partialorder %v812, 0.0
        %vm853 = vcmp.gt.f32.partialorder %v814, 0.0
        %vm854 = vcmp.gt.f32.partialorder %v818, 0.0
        %vm855 = vcmp.gt.f32.partialorder %v820, 0.0
        %vm856 = vcmp.gt.f32.partialorder %v822, 0.0
        %vm857 = vcmp.gt.f32.partialorder %v824, 0.0
        %v858 = vmul.f32 %v748, 0.1
        %v859 = vmul.f32 %v750, 0.1
        %v860 = vmul.f32 %v752, 0.1
        %v861 = vmul.f32 %v754, 0.1
        %v862 = vmul.f32 %v758, 0.1
        %v863 = vmul.f32 %v760, 0.1
        %v864 = vmul.f32 %v762, 0.1
        %v865 = vmul.f32 %v764, 0.1
        %v866 = vmul.f32 %v768, 0.1
        %v867 = vmul.f32 %v770, 0.1
        %v868 = vmul.f32 %v772, 0.1
        %v869 = vmul.f32 %v774, 0.1
        %v870 = vmul.f32 %v778, 0.1
        %v871 = vmul.f32 %v780, 0.1
        %v872 = vmul.f32 %v782, 0.1
        %v873 = vmul.f32 %v784, 0.1
        %v874 = vmul.f32 %v788, 0.1
        %v875 = vmul.f32 %v790, 0.1
        %v876 = vmul.f32 %v792, 0.1
        %v877 = vmul.f32 %v794, 0.1
        %v878 = vmul.f32 %v798, 0.1
        %v879 = vmul.f32 %v800, 0.1
        %v880 = vmul.f32 %v802, 0.1
        %v881 = vmul.f32 %v804, 0.1
        %v882 = vmul.f32 %v808, 0.1
        %v883 = vmul.f32 %v810, 0.1
        %v884 = vmul.f32 %v812, 0.1
        %v885 = vmul.f32 %v814, 0.1
        %v886 = vmul.f32 %v818, 0.1
        %v887 = vmul.f32 %v820, 0.1
        %v888 = vmul.f32 %v822, 0.1
        %v889 = vmul.f32 %v824, 0.1
        %v890 = vsel %vm826, %v748, %v858
        %v891 = vsel %vm827, %v750, %v859
        %v892 = vsel %vm828, %v752, %v860
        %v893 = vsel %vm829, %v754, %v861
        %v894 = vsel %vm830, %v758, %v862
        %v895 = vsel %vm831, %v760, %v863
        %v896 = vsel %vm832, %v762, %v864
        %v897 = vsel %vm833, %v764, %v865
        %v898 = vsel %vm834, %v768, %v866
        %v899 = vsel %vm835, %v770, %v867
        %v900 = vsel %vm836, %v772, %v868
        %v901 = vsel %vm837, %v774, %v869
        %v902 = vsel %vm838, %v778, %v870
        %v903 = vsel %vm839, %v780, %v871
        %v904 = vsel %vm840, %v782, %v872
        %v905 = vsel %vm841, %v784, %v873
        %v906 = vsel %vm842, %v788, %v874
        %v907 = vsel %vm843, %v790, %v875
        %v908 = vsel %vm844, %v792, %v876
        %v909 = vsel %vm845, %v794, %v877
        %v910 = vsel %vm846, %v798, %v878
        %v911 = vsel %vm847, %v800, %v879
        %v912 = vsel %vm848, %v802, %v880
        %v913 = vsel %vm849, %v804, %v881
        %v914 = vsel %vm850, %v808, %v882
        %v915 = vsel %vm851, %v810, %v883
        %v916 = vsel %vm852, %v812, %v884
        %v917 = vsel %vm853, %v814, %v885
        %v918 = vsel %vm854, %v818, %v886
        %v919 = vsel %vm855, %v820, %v887
        %v920 = vsel %vm856, %v822, %v888
        %v921 = vsel %vm857, %v824, %v889
        %v922 = vpack.c.bf16 %v892, %v890
        %v923 = vpack.c.bf16 %v893, %v891
        %v924 = vpack.c.bf16 %v896, %v894
        %v925 = vpack.c.bf16 %v897, %v895
        %v926 = vpack.c.bf16 %v900, %v898
        %v927 = vpack.c.bf16 %v901, %v899
        %v928 = vpack.c.bf16 %v904, %v902
        %v929 = vpack.c.bf16 %v905, %v903
        %v930 = vpack.c.bf16 %v908, %v906
        %v931 = vpack.c.bf16 %v909, %v907
        %v932 = vpack.c.bf16 %v912, %v910
        %v933 = vpack.c.bf16 %v913, %v911
        %v934 = vpack.c.bf16 %v916, %v914
        %v935 = vpack.c.bf16 %v917, %v915
        %v936 = vpack.c.bf16 %v920, %v918
        %v937 = vpack.c.bf16 %v921, %v919
        %v938 = vld [vmem:[#allocation7] sm:$0xf]
        %v939 = vld [vmem:[#allocation7 + $0x4] sm:$0xf]
        %v940 = vld [vmem:[#allocation7 + $0x8] sm:$0xf]
        %v941 = vld [vmem:[#allocation7 + $0xc] sm:$0xf]
        %v942 = vld [vmem:[#allocation7 + $0x10] sm:$0xf]
        %v943 = vld [vmem:[#allocation7 + $0x14] sm:$0xf]
        %v944 = vld [vmem:[#allocation7 + $0x18] sm:$0xf]
        %v945 = vld [vmem:[#allocation7 + $0x1c] sm:$0xf]
        %v946 = vld [vmem:[#allocation7 + $0x20] sm:$0xf]
        %v947 = vld [vmem:[#allocation7 + $0x24] sm:$0xf]
        %v948 = vld [vmem:[#allocation7 + $0x28] sm:$0xf]
        %v949 = vld [vmem:[#allocation7 + $0x2c] sm:$0xf]
        %v950 = vld [vmem:[#allocation7 + $0x30] sm:$0xf]
        %v951 = vld [vmem:[#allocation7 + $0x34] sm:$0xf]
        %v952 = vld [vmem:[#allocation7 + $0x38] sm:$0xf]
        %v953 = vld [vmem:[#allocation7 + $0x3c] sm:$0xf]
        %v954 = vld [vmem:[#allocation7 + $0x40] sm:$0xf]
        %v955 = vld [vmem:[#allocation7 + $0x44] sm:$0xf]
        %v956 = vld [vmem:[#allocation7 + $0x48] sm:$0xf]
        %v957 = vld [vmem:[#allocation7 + $0x4c] sm:$0xf]
        %v958 = vld [vmem:[#allocation7 + $0x50] sm:$0xf]
        %v959 = vld [vmem:[#allocation7 + $0x54] sm:$0xf]
        %v960 = vld [vmem:[#allocation7 + $0x58] sm:$0xf]
        %v961 = vld [vmem:[#allocation7 + $0x5c] sm:$0xf]
        %v962 = vld [vmem:[#allocation7 + $0x60] sm:$0xf]
        %v963 = vld [vmem:[#allocation7 + $0x64] sm:$0xf]
        %v964 = vld [vmem:[#allocation7 + $0x68] sm:$0xf]
        %v965 = vld [vmem:[#allocation7 + $0x6c] sm:$0xf]
        %v966 = vld [vmem:[#allocation7 + $0x70] sm:$0xf]
        %v967 = vld [vmem:[#allocation7 + $0x74] sm:$0xf]
        %v968 = vld [vmem:[#allocation7 + $0x78] sm:$0xf]
        %v969 = vld [vmem:[#allocation7 + $0x7c] sm:$0xf]
        %v970 = vld [vmem:[%s4] sm:$0x1]
        %v972 = vlaneseq
        %v973 = vshrl.u32 %v972, 7
        %v974 = vsub.s32 0, %v973
        %v975 = vrot.slane %v970, %v974
        %v1009 = vunpack.c.l.b16 %v938
        %v1010 = vunpack.c.l.b16 %v939
        %v1011 = vunpack.c.l.b16 %v940
        %v1012 = vunpack.c.l.b16 %v941
        %v1013 = vunpack.c.l.b16 %v942
        %v1014 = vunpack.c.l.b16 %v943
        %v1015 = vunpack.c.l.b16 %v944
        %v1016 = vunpack.c.l.b16 %v945
        %v1017 = vunpack.c.l.b16 %v946
        %v1018 = vunpack.c.l.b16 %v947
        %v1019 = vunpack.c.l.b16 %v948
        %v1020 = vunpack.c.l.b16 %v949
        %v1021 = vunpack.c.l.b16 %v950
        %v1022 = vunpack.c.l.b16 %v951
        %v1023 = vunpack.c.l.b16 %v952
        %v1024 = vunpack.c.l.b16 %v953
        %v1025 = vunpack.c.l.b16 %v954
        %v1026 = vunpack.c.l.b16 %v955
        %v1027 = vunpack.c.l.b16 %v956
        %v1028 = vunpack.c.l.b16 %v957
        %v1029 = vunpack.c.l.b16 %v958
        %v1030 = vunpack.c.l.b16 %v959
        %v1031 = vunpack.c.l.b16 %v960
        %v1032 = vunpack.c.l.b16 %v961
        %v1033 = vunpack.c.l.b16 %v962
        %v1034 = vunpack.c.l.b16 %v963
        %v1035 = vunpack.c.l.b16 %v964
        %v1036 = vunpack.c.l.b16 %v965
        %v1037 = vunpack.c.l.b16 %v966
        %v1038 = vunpack.c.l.b16 %v967
        %v1039 = vunpack.c.l.b16 %v968
        %v1040 = vunpack.c.l.b16 %v969
        %v1041 = vpack.c.b16 %v1010, %v1009
        %v1042 = vpack.c.b16 %v1012, %v1011
        %v1043 = vpack.c.b16 %v1014, %v1013
        %v1044 = vpack.c.b16 %v1016, %v1015
        %v1045 = vpack.c.b16 %v1018, %v1017
        %v1046 = vpack.c.b16 %v1020, %v1019
        %v1047 = vpack.c.b16 %v1022, %v1021
        %v1048 = vpack.c.b16 %v1024, %v1023
        %v1049 = vpack.c.b16 %v1026, %v1025
        %v1050 = vpack.c.b16 %v1028, %v1027
        %v1051 = vpack.c.b16 %v1030, %v1029
        %v1052 = vpack.c.b16 %v1032, %v1031
        %v1053 = vpack.c.b16 %v1034, %v1033
        %v1054 = vpack.c.b16 %v1036, %v1035
        %v1055 = vpack.c.b16 %v1038, %v1037
        %v1056 = vpack.c.b16 %v1040, %v1039
        %1073 = vmatprep.subr.bf16.mxu0 0
        %1074 = vmatpush1.bf16.msra.mxu0 %v1041
        %1075 = vmatprep.subr.bf16.mxu0 0
        %1076 = vmatpush1.bf16.msra.mxu0 %v1042
        %1077 = vmatprep.subr.bf16.mxu0 0
        %1078 = vmatpush1.bf16.msra.mxu0 %v1043
        %1079 = vmatprep.subr.bf16.mxu0 0
        %1080 = vmatpush1.bf16.msra.mxu0 %v1044
        %1081 = vmatprep.subr.bf16.mxu0 0
        %1082 = vmatpush1.bf16.msra.mxu0 %v1045
        %1083 = vmatprep.subr.bf16.mxu0 0
        %1084 = vmatpush1.bf16.msra.mxu0 %v1046
        %1085 = vmatprep.subr.bf16.mxu0 0
        %1086 = vmatpush1.bf16.msra.mxu0 %v1047
        %1087 = vmatprep.subr.bf16.mxu0 0
        %1088 = vmatpush1.bf16.msra.mxu0 %v1048
        %1089 = vmatprep.subr.bf16.mxu0 0
        %1090 = vmatpush1.bf16.msra.mxu0 %v1049
        %1091 = vmatprep.subr.bf16.mxu0 0
        %1092 = vmatpush1.bf16.msra.mxu0 %v1050
        %1093 = vmatprep.subr.bf16.mxu0 0
        %1094 = vmatpush1.bf16.msra.mxu0 %v1051
        %1095 = vmatprep.subr.bf16.mxu0 0
        %1096 = vmatpush1.bf16.msra.mxu0 %v1052
        %1097 = vmatprep.subr.bf16.mxu0 0
        %1098 = vmatpush1.bf16.msra.mxu0 %v1053
        %1099 = vmatprep.subr.bf16.mxu0 0
        %1100 = vmatpush1.bf16.msra.mxu0 %v1054
        %1101 = vmatprep.subr.bf16.mxu0 0
        %1102 = vmatpush1.bf16.msra.mxu0 %v1055
        %1103 = vmatprep.subr.bf16.mxu0 0
        %1104 = vmatpush1.bf16.msra.mxu0 %v1056
        %1105 = vmatprep.mubr.bf16.mxu0 %v923
        %1106 = vmatmul.mubr.bf16.gmra.mrb[0].mxu0 %v922
        %v1107 = vpop.f32.mrb[0].mxu0
        %v1108 = vadd.f32 %v975, %v1107
        %v1109 = vpop.f32.mrb[0].mxu0
        %v1110 = vpop.f32.mrb[0].mxu0
        %v1111 = vadd.f32 %v975, %v1110
        %v1112 = vpop.f32.mrb[0].mxu0
        %1113 = vmatprep.mubr.bf16.mxu0 %v925
        %1114 = vmatmul.mubr.bf16.gmra.mrb[0].mxu0 %v924
        %v1115 = vpop.f32.mrb[0].mxu0
        %v1116 = vadd.f32 %v975, %v1115
        %v1117 = vpop.f32.mrb[0].mxu0
        %v1118 = vpop.f32.mrb[0].mxu0
        %v1119 = vadd.f32 %v975, %v1118
        %v1120 = vpop.f32.mrb[0].mxu0
        %1121 = vmatprep.mubr.bf16.mxu0 %v927
        %1122 = vmatmul.mubr.bf16.gmra.mrb[0].mxu0 %v926
        %v1123 = vpop.f32.mrb[0].mxu0
        %v1124 = vadd.f32 %v975, %v1123
        %v1125 = vpop.f32.mrb[0].mxu0
        %v1126 = vpop.f32.mrb[0].mxu0
        %v1127 = vadd.f32 %v975, %v1126
        %v1128 = vpop.f32.mrb[0].mxu0
        %1129 = vmatprep.mubr.bf16.mxu0 %v929
        %1130 = vmatmul.mubr.bf16.gmra.mrb[0].mxu0 %v928
        %v1131 = vpop.f32.mrb[0].mxu0
        %v1132 = vadd.f32 %v975, %v1131
        %v1133 = vpop.f32.mrb[0].mxu0
        %v1134 = vpop.f32.mrb[0].mxu0
        %v1135 = vadd.f32 %v975, %v1134
        %v1136 = vpop.f32.mrb[0].mxu0
        %1137 = vmatprep.mubr.bf16.mxu0 %v931
        %1138 = vmatmul.mubr.bf16.gmra.mrb[0].mxu0 %v930
        %v1139 = vpop.f32.mrb[0].mxu0
        %v1140 = vadd.f32 %v975, %v1139
        %v1141 = vpop.f32.mrb[0].mxu0
        %v1142 = vpop.f32.mrb[0].mxu0
        %v1143 = vadd.f32 %v975, %v1142
        %v1144 = vpop.f32.mrb[0].mxu0
        %1145 = vmatprep.mubr.bf16.mxu0 %v933
        %1146 = vmatmul.mubr.bf16.gmra.mrb[0].mxu0 %v932
        %v1147 = vpop.f32.mrb[0].mxu0
        %v1148 = vadd.f32 %v975, %v1147
        %v1149 = vpop.f32.mrb[0].mxu0
        %v1150 = vpop.f32.mrb[0].mxu0
        %v1151 = vadd.f32 %v975, %v1150
        %v1152 = vpop.f32.mrb[0].mxu0
        %1153 = vmatprep.mubr.bf16.mxu0 %v935
        %1154 = vmatmul.mubr.bf16.gmra.mrb[0].mxu0 %v934
        %v1155 = vpop.f32.mrb[0].mxu0
        %v1156 = vadd.f32 %v975, %v1155
        %v1157 = vpop.f32.mrb[0].mxu0
        %v1158 = vpop.f32.mrb[0].mxu0
        %v1159 = vadd.f32 %v975, %v1158
        %v1160 = vpop.f32.mrb[0].mxu0
        %1161 = vmatprep.mubr.bf16.mxu0 %v937
        %1162 = vmatmul.mubr.bf16.gmra.mrb[0].mxu0 %v936
        %v1163 = vpop.f32.mrb[0].mxu0
        %v1164 = vadd.f32 %v975, %v1163
        %v1165 = vpop.f32.mrb[0].mxu0
        %v1166 = vpop.f32.mrb[0].mxu0
        %v1167 = vadd.f32 %v975, %v1166
        %v1168 = vpop.f32.mrb[0].mxu0
        %1169 = vdwg.mxu0
        %vm1170 = vcmp.gt.f32.partialorder %v1108, 0.0
        %vm1171 = vcmp.gt.f32.partialorder %v1111, 0.0
        %vm1172 = vcmp.gt.f32.partialorder %v1116, 0.0
        %vm1173 = vcmp.gt.f32.partialorder %v1119, 0.0
        %vm1174 = vcmp.gt.f32.partialorder %v1124, 0.0
        %vm1175 = vcmp.gt.f32.partialorder %v1127, 0.0
        %vm1176 = vcmp.gt.f32.partialorder %v1132, 0.0
        %vm1177 = vcmp.gt.f32.partialorder %v1135, 0.0
        %vm1178 = vcmp.gt.f32.partialorder %v1140, 0.0
        %vm1179 = vcmp.gt.f32.partialorder %v1143, 0.0
        %vm1180 = vcmp.gt.f32.partialorder %v1148, 0.0
        %vm1181 = vcmp.gt.f32.partialorder %v1151, 0.0
        %vm1182 = vcmp.gt.f32.partialorder %v1156, 0.0
        %vm1183 = vcmp.gt.f32.partialorder %v1159, 0.0
        %vm1184 = vcmp.gt.f32.partialorder %v1164, 0.0
        %vm1185 = vcmp.gt.f32.partialorder %v1167, 0.0
        %v1186 = vmul.f32 %v1108, 0.1
        %v1187 = vmul.f32 %v1111, 0.1
        %v1188 = vmul.f32 %v1116, 0.1
        %v1189 = vmul.f32 %v1119, 0.1
        %v1190 = vmul.f32 %v1124, 0.1
        %v1191 = vmul.f32 %v1127, 0.1
        %v1192 = vmul.f32 %v1132, 0.1
        %v1193 = vmul.f32 %v1135, 0.1
        %v1194 = vmul.f32 %v1140, 0.1
        %v1195 = vmul.f32 %v1143, 0.1
        %v1196 = vmul.f32 %v1148, 0.1
        %v1197 = vmul.f32 %v1151, 0.1
        %v1198 = vmul.f32 %v1156, 0.1
        %v1199 = vmul.f32 %v1159, 0.1
        %v1200 = vmul.f32 %v1164, 0.1
        %v1201 = vmul.f32 %v1167, 0.1
        %v1202 = vsel %vm1170, %v1108, %v1186
        %v1203 = vsel %vm1171, %v1111, %v1187
        %v1204 = vsel %vm1172, %v1116, %v1188
        %v1205 = vsel %vm1173, %v1119, %v1189
        %v1206 = vsel %vm1174, %v1124, %v1190
        %v1207 = vsel %vm1175, %v1127, %v1191
        %v1208 = vsel %vm1176, %v1132, %v1192
        %v1209 = vsel %vm1177, %v1135, %v1193
        %v1210 = vsel %vm1178, %v1140, %v1194
        %v1211 = vsel %vm1179, %v1143, %v1195
        %v1212 = vsel %vm1180, %v1148, %v1196
        %v1213 = vsel %vm1181, %v1151, %v1197
        %v1214 = vsel %vm1182, %v1156, %v1198
        %v1215 = vsel %vm1183, %v1159, %v1199
        %v1216 = vsel %vm1184, %v1164, %v1200
        %v1217 = vsel %vm1185, %v1167, %v1201
        %v1218 = vpack.c.bf16 %v1203, %v1202
        %v1219 = vpack.c.bf16 %v1205, %v1204
        %v1220 = vpack.c.bf16 %v1207, %v1206
        %v1221 = vpack.c.bf16 %v1209, %v1208
        %v1222 = vpack.c.bf16 %v1211, %v1210
        %v1223 = vpack.c.bf16 %v1213, %v1212
        %v1224 = vpack.c.bf16 %v1215, %v1214
        %v1225 = vpack.c.bf16 %v1217, %v1216
        %v1226 = vld [vmem:[#allocation8] sm:$0xf]
        %v1227 = vld [vmem:[#allocation8 + $0x4] sm:$0xf]
        %v1228 = vld [vmem:[#allocation8 + $0x8] sm:$0xf]
        %v1229 = vld [vmem:[#allocation8 + $0xc] sm:$0xf]
        %v1230 = vld [vmem:[#allocation8 + $0x10] sm:$0xf]
        %v1231 = vld [vmem:[#allocation8 + $0x14] sm:$0xf]
        %v1232 = vld [vmem:[#allocation8 + $0x18] sm:$0xf]
        %v1233 = vld [vmem:[#allocation8 + $0x1c] sm:$0xf]
        %v1234 = vld [vmem:[#allocation8 + $0x20] sm:$0xf]
        %v1235 = vld [vmem:[#allocation8 + $0x24] sm:$0xf]
        %v1236 = vld [vmem:[#allocation8 + $0x28] sm:$0xf]
        %v1237 = vld [vmem:[#allocation8 + $0x2c] sm:$0xf]
        %v1238 = vld [vmem:[#allocation8 + $0x30] sm:$0xf]
        %v1239 = vld [vmem:[#allocation8 + $0x34] sm:$0xf]
        %v1240 = vld [vmem:[#allocation8 + $0x38] sm:$0xf]
        %v1241 = vld [vmem:[#allocation8 + $0x3c] sm:$0xf]
        %v1242 = vld [vmem:[%s6] sm:$0x1]
        %v1244 = vlaneseq
        %v1245 = vshrl.u32 %v1244, 7
        %v1246 = vsub.s32 0, %v1245
        %v1247 = vrot.slane %v1242, %v1246
        %v1265 = vunpack.c.l.b16 %v1226
        %v1266 = vunpack.c.l.b16 %v1227
        %v1267 = vunpack.c.l.b16 %v1228
        %v1268 = vunpack.c.l.b16 %v1229
        %v1269 = vunpack.c.l.b16 %v1230
        %v1270 = vunpack.c.l.b16 %v1231
        %v1271 = vunpack.c.l.b16 %v1232
        %v1272 = vunpack.c.l.b16 %v1233
        %v1273 = vunpack.c.l.b16 %v1234
        %v1274 = vunpack.c.l.b16 %v1235
        %v1275 = vunpack.c.l.b16 %v1236
        %v1276 = vunpack.c.l.b16 %v1237
        %v1277 = vunpack.c.l.b16 %v1238
        %v1278 = vunpack.c.l.b16 %v1239
        %v1279 = vunpack.c.l.b16 %v1240
        %v1280 = vunpack.c.l.b16 %v1241
        %v1281 = vpack.c.b16 %v1266, %v1265
        %v1282 = vpack.c.b16 %v1268, %v1267
        %v1283 = vpack.c.b16 %v1270, %v1269
        %v1284 = vpack.c.b16 %v1272, %v1271
        %v1285 = vpack.c.b16 %v1274, %v1273
        %v1286 = vpack.c.b16 %v1276, %v1275
        %v1287 = vpack.c.b16 %v1278, %v1277
        %v1288 = vpack.c.b16 %v1280, %v1279
        %1297 = vmatprep.subr.bf16.mxu0 0
        %1298 = vmatpush1.bf16.msra.mxu0 %v1281
        %1299 = vmatprep.subr.bf16.mxu0 0
        %1300 = vmatpush1.bf16.msra.mxu0 %v1282
        %1301 = vmatprep.subr.bf16.mxu0 0
        %1302 = vmatpush1.bf16.msra.mxu0 %v1283
        %1303 = vmatprep.subr.bf16.mxu0 0
        %1304 = vmatpush1.bf16.msra.mxu0 %v1284
        %1305 = vmatprep.subr.bf16.mxu0 0
        %1306 = vmatpush1.bf16.msra.mxu0 %v1285
        %1307 = vmatprep.subr.bf16.mxu0 0
        %1308 = vmatpush1.bf16.msra.mxu0 %v1286
        %1309 = vmatprep.subr.bf16.mxu0 0
        %1310 = vmatpush1.bf16.msra.mxu0 %v1287
        %1311 = vmatprep.subr.bf16.mxu0 0
        %1312 = vmatpush1.bf16.msra.mxu0 %v1288
        %1313 = vmatprep.subr.bf16.mxu0 0
        %1314 = vmatpush1.bf16.msra.mxu0 0
        %1315 = vmatprep.subr.bf16.mxu0 0
        %1316 = vmatpush1.bf16.msra.mxu0 0
        %1317 = vmatprep.subr.bf16.mxu0 0
        %1318 = vmatpush1.bf16.msra.mxu0 0
        %1319 = vmatprep.subr.bf16.mxu0 0
        %1320 = vmatpush1.bf16.msra.mxu0 0
        %1321 = vmatprep.subr.bf16.mxu0 0
        %1322 = vmatpush1.bf16.msra.mxu0 0
        %1323 = vmatprep.subr.bf16.mxu0 0
        %1324 = vmatpush1.bf16.msra.mxu0 0
        %1325 = vmatprep.subr.bf16.mxu0 0
        %1326 = vmatpush1.bf16.msra.mxu0 0
        %1327 = vmatprep.subr.bf16.mxu0 0
        %1328 = vmatpush1.bf16.msra.mxu0 0
        %1329 = vmatprep.mubr.bf16.mxu0 0
        %1330 = vmatmul.mubr.bf16.gmra.mrb[0].mxu0 %v1218
        %v1331 = vpop.f32.mrb[0].mxu0
        %v1332 = vadd.f32 %v1247, %v1331
        %v1333 = vpop.f32.mrb[0].mxu0
        %v1334 = vpop.f32.mrb[0].mxu0
        %v1335 = vadd.f32 %v1247, %v1334
        %v1336 = vpop.f32.mrb[0].mxu0
        %1337 = vmatprep.mubr.bf16.mxu0 0
        %1338 = vmatmul.mubr.bf16.gmra.mrb[0].mxu0 %v1219
        %v1339 = vpop.f32.mrb[0].mxu0
        %v1340 = vadd.f32 %v1247, %v1339
        %v1341 = vpop.f32.mrb[0].mxu0
        %v1342 = vpop.f32.mrb[0].mxu0
        %v1343 = vadd.f32 %v1247, %v1342
        %v1344 = vpop.f32.mrb[0].mxu0
        %1345 = vmatprep.mubr.bf16.mxu0 0
        %1346 = vmatmul.mubr.bf16.gmra.mrb[0].mxu0 %v1220
        %v1347 = vpop.f32.mrb[0].mxu0
        %v1348 = vadd.f32 %v1247, %v1347
        %v1349 = vpop.f32.mrb[0].mxu0
        %v1350 = vpop.f32.mrb[0].mxu0
        %v1351 = vadd.f32 %v1247, %v1350
        %v1352 = vpop.f32.mrb[0].mxu0
        %1353 = vmatprep.mubr.bf16.mxu0 0
        %1354 = vmatmul.mubr.bf16.gmra.mrb[0].mxu0 %v1221
        %v1355 = vpop.f32.mrb[0].mxu0
        %v1356 = vadd.f32 %v1247, %v1355
        %v1357 = vpop.f32.mrb[0].mxu0
        %v1358 = vpop.f32.mrb[0].mxu0
        %v1359 = vadd.f32 %v1247, %v1358
        %v1360 = vpop.f32.mrb[0].mxu0
        %1361 = vmatprep.mubr.bf16.mxu0 0
        %1362 = vmatmul.mubr.bf16.gmra.mrb[0].mxu0 %v1222
        %v1363 = vpop.f32.mrb[0].mxu0
        %v1364 = vadd.f32 %v1247, %v1363
        %v1365 = vpop.f32.mrb[0].mxu0
        %v1366 = vpop.f32.mrb[0].mxu0
        %v1367 = vadd.f32 %v1247, %v1366
        %v1368 = vpop.f32.mrb[0].mxu0
        %1369 = vmatprep.mubr.bf16.mxu0 0
        %1370 = vmatmul.mubr.bf16.gmra.mrb[0].mxu0 %v1223
        %v1371 = vpop.f32.mrb[0].mxu0
        %v1372 = vadd.f32 %v1247, %v1371
        %v1373 = vpop.f32.mrb[0].mxu0
        %v1374 = vpop.f32.mrb[0].mxu0
        %v1375 = vadd.f32 %v1247, %v1374
        %v1376 = vpop.f32.mrb[0].mxu0
        %1377 = vmatprep.mubr.bf16.mxu0 0
        %1378 = vmatmul.mubr.bf16.gmra.mrb[0].mxu0 %v1224
        %v1379 = vpop.f32.mrb[0].mxu0
        %v1380 = vadd.f32 %v1247, %v1379
        %v1381 = vpop.f32.mrb[0].mxu0
        %v1382 = vpop.f32.mrb[0].mxu0
        %v1383 = vadd.f32 %v1247, %v1382
        %v1384 = vpop.f32.mrb[0].mxu0
        %1385 = vmatprep.mubr.bf16.mxu0 0
        %1386 = vmatmul.mubr.bf16.gmra.mrb[0].mxu0 %v1225
        %v1387 = vpop.f32.mrb[0].mxu0
        %v1388 = vadd.f32 %v1247, %v1387
        %v1389 = vpop.f32.mrb[0].mxu0
        %v1390 = vpop.f32.mrb[0].mxu0
        %v1391 = vadd.f32 %v1247, %v1390
        %v1392 = vpop.f32.mrb[0].mxu0
        %1393 = vdwg.mxu0
        %vm1394 = vcmp.gt.f32.partialorder %v1332, 0.0
        %vm1395 = vcmp.gt.f32.partialorder %v1335, 0.0
        %vm1396 = vcmp.gt.f32.partialorder %v1340, 0.0
        %vm1397 = vcmp.gt.f32.partialorder %v1343, 0.0
        %vm1398 = vcmp.gt.f32.partialorder %v1348, 0.0
        %vm1399 = vcmp.gt.f32.partialorder %v1351, 0.0
        %vm1400 = vcmp.gt.f32.partialorder %v1356, 0.0
        %vm1401 = vcmp.gt.f32.partialorder %v1359, 0.0
        %vm1402 = vcmp.gt.f32.partialorder %v1364, 0.0
        %vm1403 = vcmp.gt.f32.partialorder %v1367, 0.0
        %vm1404 = vcmp.gt.f32.partialorder %v1372, 0.0
        %vm1405 = vcmp.gt.f32.partialorder %v1375, 0.0
        %vm1406 = vcmp.gt.f32.partialorder %v1380, 0.0
        %vm1407 = vcmp.gt.f32.partialorder %v1383, 0.0
        %vm1408 = vcmp.gt.f32.partialorder %v1388, 0.0
        %vm1409 = vcmp.gt.f32.partialorder %v1391, 0.0
        %v1410 = vmul.f32 %v1332, 0.1
        %v1411 = vmul.f32 %v1335, 0.1
        %v1412 = vmul.f32 %v1340, 0.1
        %v1413 = vmul.f32 %v1343, 0.1
        %v1414 = vmul.f32 %v1348, 0.1
        %v1415 = vmul.f32 %v1351, 0.1
        %v1416 = vmul.f32 %v1356, 0.1
        %v1417 = vmul.f32 %v1359, 0.1
        %v1418 = vmul.f32 %v1364, 0.1
        %v1419 = vmul.f32 %v1367, 0.1
        %v1420 = vmul.f32 %v1372, 0.1
        %v1421 = vmul.f32 %v1375, 0.1
        %v1422 = vmul.f32 %v1380, 0.1
        %v1423 = vmul.f32 %v1383, 0.1
        %v1424 = vmul.f32 %v1388, 0.1
        %v1425 = vmul.f32 %v1391, 0.1
        %v1426 = vsel %vm1394, %v1332, %v1410
        %v1427 = vsel %vm1395, %v1335, %v1411
        %v1428 = vsel %vm1396, %v1340, %v1412
        %v1429 = vsel %vm1397, %v1343, %v1413
        %v1430 = vsel %vm1398, %v1348, %v1414
        %v1431 = vsel %vm1399, %v1351, %v1415
        %v1432 = vsel %vm1400, %v1356, %v1416
        %v1433 = vsel %vm1401, %v1359, %v1417
        %v1434 = vsel %vm1402, %v1364, %v1418
        %v1435 = vsel %vm1403, %v1367, %v1419
        %v1436 = vsel %vm1404, %v1372, %v1420
        %v1437 = vsel %vm1405, %v1375, %v1421
        %v1438 = vsel %vm1406, %v1380, %v1422
        %v1439 = vsel %vm1407, %v1383, %v1423
        %v1440 = vsel %vm1408, %v1388, %v1424
        %v1441 = vsel %vm1409, %v1391, %v1425
        %v1442 = vpack.c.bf16 %v1427, %v1426
        %v1443 = vpack.c.bf16 %v1429, %v1428
        %v1444 = vpack.c.bf16 %v1431, %v1430
        %v1445 = vpack.c.bf16 %v1433, %v1432
        %v1446 = vpack.c.bf16 %v1435, %v1434
        %v1447 = vpack.c.bf16 %v1437, %v1436
        %v1448 = vpack.c.bf16 %v1439, %v1438
        %v1449 = vpack.c.bf16 %v1441, %v1440
        %v1450 = vld [vmem:[#allocation10] sm:$0xf]
        %v1451 = vld [vmem:[#allocation10 + $0x4] sm:$0xf]
        %v1452 = vld [vmem:[#allocation10 + $0x8] sm:$0xf]
        %v1453 = vld [vmem:[#allocation10 + $0xc] sm:$0xf]
        %v1454 = vld [vmem:[#allocation10 + $0x10] sm:$0xf]
        %v1455 = vld [vmem:[#allocation10 + $0x14] sm:$0xf]
        %v1456 = vld [vmem:[#allocation10 + $0x18] sm:$0xf]
        %v1457 = vld [vmem:[#allocation10 + $0x1c] sm:$0xf]
        %v1458 = vld [vmem:[#allocation10 + $0x20] sm:$0xf]
        %v1459 = vld [vmem:[#allocation10 + $0x24] sm:$0xf]
        %v1460 = vld [vmem:[#allocation10 + $0x28] sm:$0xf]
        %v1461 = vld [vmem:[#allocation10 + $0x2c] sm:$0xf]
        %v1462 = vld [vmem:[#allocation10 + $0x30] sm:$0xf]
        %v1463 = vld [vmem:[#allocation10 + $0x34] sm:$0xf]
        %v1464 = vld [vmem:[#allocation10 + $0x38] sm:$0xf]
        %v1465 = vld [vmem:[#allocation10 + $0x3c] sm:$0xf]
        %v1466 = vld [vmem:[%s8] sm:$0x1]
        %v1468 = vlaneseq
        %v1469 = vshrl.u32 %v1468, 7
        %v1470 = vsub.s32 0, %v1469
        %v1471 = vrot.slane %v1466, %v1470
        %v1489 = vunpack.c.l.b16 %v1450
        %v1490 = vunpack.c.l.b16 %v1451
        %v1491 = vunpack.c.l.b16 %v1452
        %v1492 = vunpack.c.l.b16 %v1453
        %v1493 = vunpack.c.l.b16 %v1454
        %v1494 = vunpack.c.l.b16 %v1455
        %v1495 = vunpack.c.l.b16 %v1456
        %v1496 = vunpack.c.l.b16 %v1457
        %v1497 = vunpack.c.l.b16 %v1458
        %v1498 = vunpack.c.l.b16 %v1459
        %v1499 = vunpack.c.l.b16 %v1460
        %v1500 = vunpack.c.l.b16 %v1461
        %v1501 = vunpack.c.l.b16 %v1462
        %v1502 = vunpack.c.l.b16 %v1463
        %v1503 = vunpack.c.l.b16 %v1464
        %v1504 = vunpack.c.l.b16 %v1465
        %v1505 = vpack.c.b16 %v1490, %v1489
        %v1506 = vpack.c.b16 %v1492, %v1491
        %v1507 = vpack.c.b16 %v1494, %v1493
        %v1508 = vpack.c.b16 %v1496, %v1495
        %v1509 = vpack.c.b16 %v1498, %v1497
        %v1510 = vpack.c.b16 %v1500, %v1499
        %v1511 = vpack.c.b16 %v1502, %v1501
        %v1512 = vpack.c.b16 %v1504, %v1503
        %1521 = vmatprep.subr.bf16.mxu0 0
        %1522 = vmatpush1.bf16.msra.mxu0 %v1505
        %1523 = vmatprep.subr.bf16.mxu0 0
        %1524 = vmatpush1.bf16.msra.mxu0 %v1506
        %1525 = vmatprep.subr.bf16.mxu0 0
        %1526 = vmatpush1.bf16.msra.mxu0 %v1507
        %1527 = vmatprep.subr.bf16.mxu0 0
        %1528 = vmatpush1.bf16.msra.mxu0 %v1508
        %1529 = vmatprep.subr.bf16.mxu0 0
        %1530 = vmatpush1.bf16.msra.mxu0 %v1509
        %1531 = vmatprep.subr.bf16.mxu0 0
        %1532 = vmatpush1.bf16.msra.mxu0 %v1510
        %1533 = vmatprep.subr.bf16.mxu0 0
        %1534 = vmatpush1.bf16.msra.mxu0 %v1511
        %1535 = vmatprep.subr.bf16.mxu0 0
        %1536 = vmatpush1.bf16.msra.mxu0 %v1512
        %1537 = vmatprep.subr.bf16.mxu0 0
        %1538 = vmatpush1.bf16.msra.mxu0 0
        %1539 = vmatprep.subr.bf16.mxu0 0
        %1540 = vmatpush1.bf16.msra.mxu0 0
        %1541 = vmatprep.subr.bf16.mxu0 0
        %1542 = vmatpush1.bf16.msra.mxu0 0
        %1543 = vmatprep.subr.bf16.mxu0 0
        %1544 = vmatpush1.bf16.msra.mxu0 0
        %1545 = vmatprep.subr.bf16.mxu0 0
        %1546 = vmatpush1.bf16.msra.mxu0 0
        %1547 = vmatprep.subr.bf16.mxu0 0
        %1548 = vmatpush1.bf16.msra.mxu0 0
        %1549 = vmatprep.subr.bf16.mxu0 0
        %1550 = vmatpush1.bf16.msra.mxu0 0
        %1551 = vmatprep.subr.bf16.mxu0 0
        %1552 = vmatpush1.bf16.msra.mxu0 0
        %1553 = vmatprep.mubr.bf16.mxu0 0
        %1554 = vmatmul.mubr.bf16.gmra.mrb[0].mxu0 %v1442
        %v1555 = vpop.f32.mrb[0].mxu0
        %v1556 = vadd.f32 %v1471, %v1555
        %v1557 = vpop.f32.mrb[0].mxu0
        %v1558 = vpop.f32.mrb[0].mxu0
        %v1559 = vadd.f32 %v1471, %v1558
        %v1560 = vpop.f32.mrb[0].mxu0
        %1561 = vmatprep.mubr.bf16.mxu0 0
        %1562 = vmatmul.mubr.bf16.gmra.mrb[0].mxu0 %v1443
        %v1563 = vpop.f32.mrb[0].mxu0
        %v1564 = vadd.f32 %v1471, %v1563
        %v1565 = vpop.f32.mrb[0].mxu0
        %v1566 = vpop.f32.mrb[0].mxu0
        %v1567 = vadd.f32 %v1471, %v1566
        %v1568 = vpop.f32.mrb[0].mxu0
        %1569 = vmatprep.mubr.bf16.mxu0 0
        %1570 = vmatmul.mubr.bf16.gmra.mrb[0].mxu0 %v1444
        %v1571 = vpop.f32.mrb[0].mxu0
        %v1572 = vadd.f32 %v1471, %v1571
        %v1573 = vpop.f32.mrb[0].mxu0
        %v1574 = vpop.f32.mrb[0].mxu0
        %v1575 = vadd.f32 %v1471, %v1574
        %v1576 = vpop.f32.mrb[0].mxu0
        %1577 = vmatprep.mubr.bf16.mxu0 0
        %1578 = vmatmul.mubr.bf16.gmra.mrb[0].mxu0 %v1445
        %v1579 = vpop.f32.mrb[0].mxu0
        %v1580 = vadd.f32 %v1471, %v1579
        %v1581 = vpop.f32.mrb[0].mxu0
        %v1582 = vpop.f32.mrb[0].mxu0
        %v1583 = vadd.f32 %v1471, %v1582
        %v1584 = vpop.f32.mrb[0].mxu0
        %1585 = vmatprep.mubr.bf16.mxu0 0
        %1586 = vmatmul.mubr.bf16.gmra.mrb[0].mxu0 %v1446
        %v1587 = vpop.f32.mrb[0].mxu0
        %v1588 = vadd.f32 %v1471, %v1587
        %v1589 = vpop.f32.mrb[0].mxu0
        %v1590 = vpop.f32.mrb[0].mxu0
        %v1591 = vadd.f32 %v1471, %v1590
        %v1592 = vpop.f32.mrb[0].mxu0
        %1593 = vmatprep.mubr.bf16.mxu0 0
        %1594 = vmatmul.mubr.bf16.gmra.mrb[0].mxu0 %v1447
        %v1595 = vpop.f32.mrb[0].mxu0
        %v1596 = vadd.f32 %v1471, %v1595
        %v1597 = vpop.f32.mrb[0].mxu0
        %v1598 = vpop.f32.mrb[0].mxu0
        %v1599 = vadd.f32 %v1471, %v1598
        %v1600 = vpop.f32.mrb[0].mxu0
        %1601 = vmatprep.mubr.bf16.mxu0 0
        %1602 = vmatmul.mubr.bf16.gmra.mrb[0].mxu0 %v1448
        %v1603 = vpop.f32.mrb[0].mxu0
        %v1604 = vadd.f32 %v1471, %v1603
        %v1605 = vpop.f32.mrb[0].mxu0
        %v1606 = vpop.f32.mrb[0].mxu0
        %v1607 = vadd.f32 %v1471, %v1606
        %v1608 = vpop.f32.mrb[0].mxu0
        %1609 = vmatprep.mubr.bf16.mxu0 0
        %1610 = vmatmul.mubr.bf16.gmra.mrb[0].mxu0 %v1449
        %v1611 = vpop.f32.mrb[0].mxu0
        %v1612 = vadd.f32 %v1471, %v1611
        %v1613 = vpop.f32.mrb[0].mxu0
        %v1614 = vpop.f32.mrb[0].mxu0
        %v1615 = vadd.f32 %v1471, %v1614
        %v1616 = vpop.f32.mrb[0].mxu0
        %1617 = vdwg.mxu0
        %1618 = vst [vmem:[%s409] sm:$0xff] %v1556
        %1619 = vst [vmem:[%s409 + $0x8] sm:$0xff] %v1559
        %1620 = vst [vmem:[%s409 + $0x10] sm:$0xff] %v1564
        %1621 = vst [vmem:[%s409 + $0x18] sm:$0xff] %v1567
        %1622 = vst [vmem:[%s409 + $0x20] sm:$0xff] %v1572
        %1623 = vst [vmem:[%s409 + $0x28] sm:$0xff] %v1575
        %1624 = vst [vmem:[%s409 + $0x30] sm:$0xff] %v1580
        %1625 = vst [vmem:[%s409 + $0x38] sm:$0xff] %v1583
        %1626 = vst [vmem:[%s409 + $0x40] sm:$0xff] %v1588
        %1627 = vst [vmem:[%s409 + $0x48] sm:$0xff] %v1591
        %1628 = vst [vmem:[%s409 + $0x50] sm:$0xff] %v1596
        %1629 = vst [vmem:[%s409 + $0x58] sm:$0xff] %v1599
        %1630 = vst [vmem:[%s409 + $0x60] sm:$0xff] %v1604
        %1631 = vst [vmem:[%s409 + $0x68] sm:$0xff] %v1607
        %1632 = vst [vmem:[%s409 + $0x70] sm:$0xff] %v1612
        %1633 = vst [vmem:[%s409 + $0x78] sm:$0xff] %v1615
        %s1634 = sand.u32 %s230, 1
        %s1635 = scalar_lea.sflag [#allocation4], %s1634
        %s1636 = sand.u32 %s230, 1
        %s1637 = smul.addr %s1636, 128
        %s1638 = scalar_lea.vmem [#allocation11], %s1637
        // Predicated region
        $region77: #{tpu_custom_call.1} parent=55 // pred_check
          %p1639 = pneg %p240
        $region78: #{tpu_custom_call.1} parent=55 // pred_check_branch
          %1641 = sbr.rel (%p1639) target = $region80
        $region79: #{tpu_custom_call.1} parent=55 // pred_region
          %s1642 = smul.u32 16, %s28
          %s1644 = ssub.s32 2048, 2048
          %1645 = vsyncadd %s1635, %s1644
          %s1646 = smul.addr %s1642, 128
          %s1647 = scalar_lea.hbm %s9, %s1646
          %s1648 = sshll.u32 %s1638, 4
          %s1649 = int_to_ptr.vmem [resolvable:$true] %s1648
          %1654 = dma.vmem_to_hbm [thread:$0]  %s1649, 2048, %s1647, %s1635, 128, 128, 8
        $region80: #{tpu_custom_call.1} parent=55 // pred_fallthru
          _
      $region56: #{tpu_custom_call.1} parent=5 // pred_fallthru
        _
      %p1655 = scmp.le.s32.totalorder 2, %s23
      // Predicated region
      $region81: #{tpu_custom_call.1} parent=5 // pred_check
        %p1656 = pneg %p1655
      $region82: #{tpu_custom_call.1} parent=5 // pred_check_branch
        %1658 = sbr.rel (%p1656) target = $region84
      $region83: #{tpu_custom_call.1} parent=5 // pred_region
        %s1659 = ssub.s32 %s23, 2
        // Predicated region
        $region85: #{tpu_custom_call.1} parent=83 // pred_check
          %p1660 = pneg %p246
        $region86: #{tpu_custom_call.1} parent=83 // pred_check_branch
          %1662 = sbr.rel (%p1660) target = $region88
        $region87: #{tpu_custom_call.1} parent=83 // pred_region
          %s1663 = sand.u32 %s231, 1
          %s1664 = scalar_lea.sflag [#allocation4], %s1663
          %s1665 = sand.u32 %s231, 1
          %s1666 = smul.addr %s1665, 128
          %s1667 = scalar_lea.vmem [#allocation11], %s1666
          %1668 = dma.done %s1664, 2048
        $region88: #{tpu_custom_call.1} parent=83 // pred_fallthru
          _
      $region84: #{tpu_custom_call.1} parent=5 // pred_fallthru
        _
    $region6: #{tpu_custom_call.1} parent=1 // loop_footer
      %s27 = sadd.s32 1, %s23
    $region7: #{tpu_custom_call.1} parent=1 // loop_footer_branch
      %22 = sbr.rel target = $region3
    $region8: #{tpu_custom_call.1} parent=1 // loop_exit
      _
    %1669 = vsyncpa [#allocation3], 1
    %s1670 = scalar_lea.sflag [#allocation3], 1
    %1671 = vsyncpa %s1670, 1
    %1672 = vsyncpa [#allocation6], 1
    %1673 = vsyncpa [#allocation9], 1
    %1674 = vsyncpa [#allocation4], 1
    %s1675 = scalar_lea.sflag [#allocation4], 1
    %1676 = vsyncpa %s1675, 1

</llo_original>
